<compile_context>
chip_gen: v7x
topology: tpu7x:2x2x1
jax: 0.10.0
libtpu: 0.0.40
codegen_flags: <defaults>
</compile_context>

<pallas_src>
import math
import functools

import jax
import jax.numpy as jnp
from jax.experimental import pallas as pl
from jax.experimental.pallas import tpu as pltpu


def _round_up(x, m):
    return (x + m - 1) // m * m


def _vmem_capacity_bytes():
    """Physical VMEM of the local chip; fall back to the v7x minimum (64 MiB)."""
    try:
        return int(pltpu.get_tpu_info().vmem_capacity_bytes)
    except Exception:
        return 64 << 20


def _working_set_bytes(Bt, S, Dp, Hp, single_buffer_weights):
    """Rough per-grid-step VMEM footprint (activations + weights + intermediates)."""
    act = 2 * 2 * Bt * S * Dp * 4                          # x + out blocks, double buffered
    wmult = 1 if single_buffer_weights else 2
    weights = wmult * (Dp * 3 * Dp * 2 + 3 * Dp * 4 + Dp * Dp * 2 + Dp * 4)
    inter = (Bt * S * 3 * Dp * (4 + 2)                     # qkv f32 + bf16 casts
             + Bt * Hp * S * S * (4 + 2 + 4)               # scores f32 + P bf16 + exp tmp
             + 2 * Bt * S * Dp * 4)                        # attn out + projected out (f32)
    return act + weights + inter


def _choose_block_batch(B, S, Dp, Hp, vmem_cap, target_rows=256, min_blocks=2):
    """Batch elements folded per grid step.

    Keep >= `min_blocks` grid steps when possible (both v7x TensorCores busy), make the
    projection matmuls >= `target_rows` rows when possible, and never exceed ~85% of
    VMEM — the (Bt, H, S, S) score/softmax intermediates are the limiting term at
    long sequence lengths."""
    divisors = [d for d in range(1, B + 1) if B % d == 0]
    fits = [d for d in divisors
            if _working_set_bytes(d, S, Dp, Hp, True) <= 0.85 * vmem_cap] or [1]
    cands = [d for d in fits if B // d >= min_blocks] or fits
    full = [d for d in cands if d * S >= target_rows]
    return min(full) if full else max(cands)


def _transformer_kernel(x_ref, wqkv_ref, bqkv_ref, wo_ref, bo_ref, out_ref, *,
                        n_head, d_k, batched_heads):
    """One grid step == `Bt` batch elements.  All refs are VMEM tiles.

    x_ref    : (Bt, S, Dp)   embedded input (token emb + positional emb), f32, lane-padded
    wqkv_ref : (Dp, 3*Dp)    fused [Wq*scale | Wk | Wv] weights, bf16 (128-aligned blocks)
    bqkv_ref : (1, 3*Dp)     fused biases (bq pre-scaled), f32
    wo_ref   : (Dp, Dp)      output projection weight, zero-padded rows/cols, bf16
    bo_ref   : (1, Dp)       output bias, f32
    out_ref  : (Bt, S, Dp)   attention output + residual, f32
    """
    Bt, S, Dp = x_ref.shape
    rows = Bt * S
    Hp = Dp // d_k                                     # heads incl. zero-padded ones

    xm = x_ref[...].reshape(rows, Dp)

    # --- fused Q/K/V projection: one MXU pass, bf16 inputs, f32 accumulation.
    #     The 1/sqrt(d_k) scale is already folded into Wq / bq by the wrapper. ---
    qkv = jnp.dot(xm.astype(jnp.bfloat16), wqkv_ref[...],
                  preferred_element_type=jnp.float32) + bqkv_ref[...]     # (rows, 3Dp)
    q2 = qkv[:, :Dp]                                   # 128-aligned lane slices (cheap)
    k2 = qkv[:, Dp:2 * Dp]
    v2 = qkv[:, 2 * Dp:]

    if batched_heads:
        # All heads in one batched dot_general (no per-head tiny matmuls).  Padded
        # heads (beyond n_head) have q=k=v=0 -> uniform softmax over zero v -> exactly 0.
        q4 = q2.astype(jnp.bfloat16).reshape(Bt, S, Hp, d_k)
        k4 = k2.astype(jnp.bfloat16).reshape(Bt, S, Hp, d_k)
        v4 = v2.astype(jnp.bfloat16).reshape(Bt, S, Hp, d_k)
        s = jnp.einsum('bqhd,bkhd->bhqk', q4, k4,
                       preferred_element_type=jnp.float32)                # (Bt,Hp,S,S)
        s = s - jnp.max(s, axis=-1, keepdims=True)
        p = jnp.exp(s)
        p = p * pl.reciprocal(jnp.sum(p, axis=-1, keepdims=True), approx=True)
        o = jnp.einsum('bhqk,bkhd->bhqd', p.astype(jnp.bfloat16), v4,
                       preferred_element_type=jnp.float32)                # (Bt,Hp,S,dk)
        # heads back on the lane axis (major-dim slices + one lane concatenate)
        attn = jnp.concatenate([o[:, h, :, :] for h in range(Hp)], axis=-1)
        attn = attn.reshape(rows, Dp)
    else:
        # Conservative per-head formulation (previously validated lowering path).
        q3 = q2.reshape(Bt, S, Dp)
        k3 = k2.reshape(Bt, S, Dp)
        v3 = v2.reshape(Bt, S, Dp)
        head_outs = []
        for h in range(n_head):                        # real (unpadded) heads only
            lo = h * d_k
            qh = q3[:, :, lo:lo + d_k].astype(jnp.bfloat16)
            kh = k3[:, :, lo:lo + d_k].astype(jnp.bfloat16)
            vh = v3[:, :, lo:lo + d_k].astype(jnp.bfloat16)
            s = jnp.einsum('bqd,bkd->bqk', qh, kh,
                           preferred_element_type=jnp.float32)            # (Bt,S,S)
            s = s - jnp.max(s, axis=-1, keepdims=True)
            p = jnp.exp(s)
            p = p * pl.reciprocal(jnp.sum(p, axis=-1, keepdims=True), approx=True)
            o = jnp.einsum('bqk,bkd->bqd', p.astype(jnp.bfloat16), vh,
                           preferred_element_type=jnp.float32)            # (Bt,S,dk)
            head_outs.append(o.reshape(rows, d_k))
        if Dp > n_head * d_k:                          # lane padding -> zero columns
            head_outs.append(jnp.zeros((rows, Dp - n_head * d_k), jnp.float32))
        attn = jnp.concatenate(head_outs, axis=-1)     # (rows, Dp)

    # --- output projection (Dp-deep, 128-aligned contraction) + bias + residual ---
    out = jnp.dot(attn.astype(jnp.bfloat16), wo_ref[...],
                  preferred_element_type=jnp.float32) + bo_ref[...]       # (rows, Dp)
    out_ref[...] = out.reshape(Bt, S, Dp) + x_ref[...]


def transformer_pallas(x_emb, params, n_head):
    """x_emb: [B, S, D] float32 (already embedded). Returns [B, S, D] float32."""
    B, S, D = x_emb.shape
    assert D % n_head == 0
    d_k = D // n_head

    # Lane-dense model dim; also a multiple of d_k so heads tile the padded lane axis.
    Dp = _round_up(D, math.lcm(128, d_k))
    pad = Dp - D
    Hp = Dp // d_k

    wq, bq, wk, bk, wv, bv, wo, bo = params
    scale = 1.0 / math.sqrt(float(d_k))

    def pad_w(w):                             # (D, D) -> (Dp, Dp), zero padded
        return jnp.pad(w, ((0, pad), (0, pad)))

    def pad_b(b):                             # (1, D) -> (1, Dp)
        return jnp.pad(b, ((0, 0), (0, pad)))

    # Fused QKV weights / bias; the attention scale is folded into Wq / bq (constant
    # weight transform, not a runtime activation pre-scale).
    wqkv = jnp.concatenate([pad_w(wq * scale), pad_w(wk), pad_w(wv)],
                           axis=1).astype(jnp.bfloat16)                  # (Dp, 3Dp)
    bqkv = jnp.concatenate([pad_b(bq * scale), pad_b(bk), pad_b(bv)],
                           axis=1).astype(jnp.float32)                   # (1, 3Dp)
    wo_p = pad_w(wo).astype(jnp.bfloat16)                                # (Dp, Dp)
    bo_p = pad_b(bo).astype(jnp.float32)                                 # (1, Dp)
    x_p = x_emb if pad == 0 else jnp.pad(x_emb, ((0, 0), (0, 0), (0, pad)))

    vmem_cap = _vmem_capacity_bytes()
    Bt = _choose_block_batch(B, S, Dp, Hp, vmem_cap)
    grid = (B // Bt,)
    # TODO(synk): when B == 1 on v7x, a second parallel grid axis over query blocks
    # would keep both TensorCores busy; not needed for these shapes.

    flops = (2 * B * S * Dp * 3 * Dp            # fused QKV projection
             + 4 * B * Hp * S * S * d_k         # scores + attn @ v
             + 2 * B * S * Dp * Dp)             # output projection
    cost = pl.CostEstimate(
        flops=int(flops),
        transcendentals=int(B * Hp * S * S),
        bytes_accessed=int(2 * B * S * Dp * 4 + wqkv.size * 2 + bqkv.size * 4
                           + wo_p.size * 2 + bo_p.size * 4))

    def build(batched_heads, single_buffer_weights):
        kern = functools.partial(_transformer_kernel, n_head=n_head, d_k=d_k,
                                 batched_heads=batched_heads)
        x_spec = pl.BlockSpec((Bt, S, Dp), lambda b: (b, 0, 0))
        # Resident weights: constant index_map, so double buffering buys nothing.
        wkw = dict(pipeline_mode=pl.Buffered(1)) if single_buffer_weights else {}
        w_specs = [
            pl.BlockSpec((Dp, 3 * Dp), lambda b: (0, 0), **wkw),
            pl.BlockSpec((1, 3 * Dp), lambda b: (0, 0), **wkw),
            pl.BlockSpec((Dp, Dp), lambda b: (0, 0), **wkw),
            pl.BlockSpec((1, Dp), lambda b: (0, 0), **wkw),
        ]
        budget = _working_set_bytes(Bt, S, Dp, Hp, single_buffer_weights)
        vmem_limit = int(min(vmem_cap, max(32 << 20, int(1.25 * budget))))
        return pl.pallas_call(
            kern,
            out_shape=jax.ShapeDtypeStruct((B, S, Dp), jnp.float32),
            grid_spec=pltpu.PrefetchScalarGridSpec(
                num_scalar_prefetch=0,
                grid=grid,
                in_specs=[x_spec] + w_specs,
                out_specs=x_spec,
            ),
            compiler_params=pltpu.CompilerParams(
                dimension_semantics=("parallel",),
                vmem_limit_bytes=vmem_limit),
            cost_estimate=cost,
        )

    # Try the most optimized configuration first; fall back to the conservative
    # (previously validated) per-head / default-buffered configuration if the Mosaic
    # lowering rejects any of the optimized constructs.
    out, last_err = None, None
    for cfg in ((True, True), (True, False), (False, True), (False, False)):
        try:
            out = jax.block_until_ready(build(*cfg)(x_p, wqkv, bqkv, wo_p, bo_p))
            break
        except Exception as e:          # lowering / compile rejection -> next config
            out, last_err = None, e
    if out is None:
        raise last_err

    return out if pad == 0 else out[..., :D]


def make_positional_encoding(seq_len, n_module):
    """Matches PositionEmbedding.__init__ exactly."""
    position = jnp.arange(seq_len, dtype=jnp.float32)[:, None]               # [S, 1]
    div_term = jnp.exp(jnp.arange(0, n_module, 2, dtype=jnp.float32)
                       * (-math.log(10000.0) / n_module))                    # [D/2]
    pe = jnp.zeros((seq_len, n_module), dtype=jnp.float32)
    pe = pe.at[:, 0::2].set(jnp.sin(position * div_term))
    pe = pe.at[:, 1::2].set(jnp.cos(position * div_term))
    return pe[None]                                                           # [1, S, D]


def reference_forward(tokens, emb_table, pe, params, n_head):
    """Pure-JAX (f32) reference of the PyTorch forward, for validation."""
    wq, bq, wk, bk, wv, bv, wo, bo = params
    B, S = tokens.shape
    D = emb_table.shape[1]
    d_k = D // n_head

    x = emb_table[tokens] + pe[:, :S]                                        # [B,S,D]
    q = x @ wq + bq
    k = x @ wk + bk
    v = x @ wv + bv

    def split(t):  # [B,S,D] -> [B,H,S,d_k]
        return t.reshape(B, S, n_head, d_k).transpose(0, 2, 1, 3)

    qh, kh, vh = split(q), split(k), split(v)
    scores = jnp.einsum('bhqd,bhkd->bhqk', qh, kh) / math.sqrt(d_k)
    scores = jax.nn.softmax(scores, axis=-1)
    o = jnp.einsum('bhqk,bhkd->bhqd', scores, vh)
    o = o.transpose(0, 2, 1, 3).reshape(B, S, D)
    return o @ wo + bo + x


if __name__ == "__main__":
    # small shapes consistent with the module
    B, S, D, H, VOCAB = 2, 8, 32, 4, 64

    key = jax.random.PRNGKey(0)
    keys = jax.random.split(key, 11)

    tokens = jax.random.randint(keys[0], (B, S), 0, VOCAB, dtype=jnp.int32)
    emb_table = jax.random.normal(keys[1], (VOCAB, D), dtype=jnp.float32) * 0.1

    def linear_params(kw, kb):
        w = jax.random.normal(kw, (D, D), dtype=jnp.float32) * (1.0 / math.sqrt(D))
        b = jax.random.normal(kb, (1, D), dtype=jnp.float32) * 0.01
        return w, b

    wq, bq = linear_params(keys[2], keys[3])
    wk, bk = linear_params(keys[4], keys[5])
    wv, bv = linear_params(keys[6], keys[7])
    wo, bo = linear_params(keys[8], keys[9])
    params = (wq, bq, wk, bk, wv, bv, wo, bo)

    pe = make_positional_encoding(seq_len=S, n_module=D)

    # embedding lookup + positional add is glue (gather), done in plain JAX
    x_emb = emb_table[tokens] + pe[:, :S]                                    # [B,S,D]

    out = transformer_pallas(x_emb, params, n_head=H)
    out = jax.block_until_ready(out)

    ref = reference_forward(tokens, emb_table, pe, params, n_head=H)
    assert out.shape == (B, S, D)
    # bf16 MXU inputs + approx reciprocal => slightly looser tolerance than the f32 ref.
    assert jnp.allclose(out, ref, atol=5e-2, rtol=5e-2), "mismatch vs reference"

    print("KERNEL_OK")
</pallas_src>

<mosaic_0001>
module attributes {stable_mosaic.version = 11 : i64} {
  func.func @_transformer_kernel(%arg0: i32, %arg1: memref<1x8x128xf32, #tpu.memory_space<vmem>>, %arg2: memref<128x384xbf16, #tpu.memory_space<vmem>>, %arg3: memref<1x384xf32, #tpu.memory_space<vmem>>, %arg4: memref<128x128xbf16, #tpu.memory_space<vmem>>, %arg5: memref<1x128xf32, #tpu.memory_space<vmem>>, %arg6: memref<1x8x128xf32, #tpu.memory_space<vmem>>) attributes {dimension_semantics = [#tpu.dimension_semantics<parallel>], iteration_bounds = array<i64: 2>, scalar_prefetch = 0 : i64, scratch_operands = 0 : i64, tpu.core_type = #tpu.core_type<tc>, window_params = [{transform_indices = @transform_0, window_bounds = array<i64: 1, 8, 128>}, {pipeline_mode = #tpu.pipeline_mode<synchronous>, transform_indices = @transform_1, window_bounds = array<i64: 128, 384>}, {pipeline_mode = #tpu.pipeline_mode<synchronous>, transform_indices = @transform_2, window_bounds = array<i64: 1, 384>}, {pipeline_mode = #tpu.pipeline_mode<synchronous>, transform_indices = @transform_3, window_bounds = array<i64: 128, 128>}, {pipeline_mode = #tpu.pipeline_mode<synchronous>, transform_indices = @transform_4, window_bounds = array<i64: 1, 128>}, {transform_indices = @transform_5, window_bounds = array<i64: 1, 8, 128>}]} {
    %c0 = arith.constant 0 : index
    %c0_0 = arith.constant 0 : index
    %c0_1 = arith.constant 0 : index
    %0 = vector.load %arg1[%c0, %c0_0, %c0_1] : memref<1x8x128xf32, #tpu.memory_space<vmem>>, vector<1x8x128xf32>
    %1 = vector.shape_cast %0 : vector<1x8x128xf32> to vector<8x128xf32>
    %2 = arith.truncf %1 : vector<8x128xf32> to vector<8x128xbf16>
    %c0_2 = arith.constant 0 : index
    %c0_3 = arith.constant 0 : index
    %3 = vector.load %arg2[%c0_2, %c0_3] : memref<128x384xbf16, #tpu.memory_space<vmem>>, vector<128x384xbf16>
    %cst = arith.constant dense<0.000000e+00> : vector<8x384xf32>
    %4 = tpu.matmul %2, %3, %cst {dimension_numbers = #tpu.dot_dimension_numbers<[1], [0], [0], [1], [0, 0, 1, 1], [], []>} : vector<8x128xbf16>, vector<128x384xbf16>, vector<8x384xf32> -> vector<8x384xf32>
    %c0_4 = arith.constant 0 : index
    %c0_5 = arith.constant 0 : index
    %5 = vector.load %arg3[%c0_4, %c0_5] : memref<1x384xf32, #tpu.memory_space<vmem>>, vector<1x384xf32>
    %6 = vector.broadcast %5 : vector<1x384xf32> to vector<8x384xf32>
    %7 = arith.addf %4, %6 : vector<8x384xf32>
    %8 = vector.extract_strided_slice %7 {offsets = [0, 0], sizes = [8, 128], strides = [1, 1]} : vector<8x384xf32> to vector<8x128xf32>
    %9 = vector.extract_strided_slice %7 {offsets = [0, 128], sizes = [8, 128], strides = [1, 1]} : vector<8x384xf32> to vector<8x128xf32>
    %10 = vector.extract_strided_slice %7 {offsets = [0, 256], sizes = [8, 128], strides = [1, 1]} : vector<8x384xf32> to vector<8x128xf32>
    %11 = vector.shape_cast %8 : vector<8x128xf32> to vector<1x8x128xf32>
    %12 = vector.shape_cast %9 : vector<8x128xf32> to vector<1x8x128xf32>
    %13 = vector.shape_cast %10 : vector<8x128xf32> to vector<1x8x128xf32>
    %14 = vector.extract_strided_slice %11 {offsets = [0, 0, 0], sizes = [1, 8, 8], strides = [1, 1, 1]} : vector<1x8x128xf32> to vector<1x8x8xf32>
    %15 = arith.truncf %14 : vector<1x8x8xf32> to vector<1x8x8xbf16>
    %16 = vector.extract_strided_slice %12 {offsets = [0, 0, 0], sizes = [1, 8, 8], strides = [1, 1, 1]} : vector<1x8x128xf32> to vector<1x8x8xf32>
    %17 = arith.truncf %16 : vector<1x8x8xf32> to vector<1x8x8xbf16>
    %18 = vector.extract_strided_slice %13 {offsets = [0, 0, 0], sizes = [1, 8, 8], strides = [1, 1, 1]} : vector<1x8x128xf32> to vector<1x8x8xf32>
    %19 = arith.truncf %18 : vector<1x8x8xf32> to vector<1x8x8xbf16>
    "tpu.trace_start"() <{level = 10 : i32, message = "bqd,bkd->bqk"}> : () -> ()
    %cst_6 = arith.constant dense<0.000000e+00> : vector<1x8x8xf32>
    %20 = tpu.matmul %15, %17, %cst_6 {dimension_numbers = #tpu.dot_dimension_numbers<[2], [2], [1], [1], [0, 0, 0, 1, 1, 1], [0], [0]>} : vector<1x8x8xbf16>, vector<1x8x8xbf16>, vector<1x8x8xf32> -> vector<1x8x8xf32>
    "tpu.trace_stop"() : () -> ()
    %cst_7 = arith.constant dense<0xFF800000> : vector<1x8xf32>
    %21 = vector.multi_reduction <maximumf>, %20, %cst_7 [2] : vector<1x8x8xf32> to vector<1x8xf32>
    %22 = vector.shape_cast %21 : vector<1x8xf32> to vector<1x8x1xf32>
    %23 = vector.broadcast %22 : vector<1x8x1xf32> to vector<1x8x8xf32>
    %24 = arith.subf %20, %23 : vector<1x8x8xf32>
    %25 = math.exp %24 : vector<1x8x8xf32>
    %cst_8 = arith.constant dense<0.000000e+00> : vector<1x8xf32>
    %26 = vector.multi_reduction <add>, %25, %cst_8 [2] : vector<1x8x8xf32> to vector<1x8xf32>
    %27 = vector.shape_cast %26 : vector<1x8xf32> to vector<1x8x1xf32>
    %28 = tpu.reciprocal %27 {approx = true} : vector<1x8x1xf32> -> vector<1x8x1xf32>
    %29 = vector.broadcast %28 : vector<1x8x1xf32> to vector<1x8x8xf32>
    %30 = arith.mulf %25, %29 : vector<1x8x8xf32>
    %31 = arith.truncf %30 : vector<1x8x8xf32> to vector<1x8x8xbf16>
    "tpu.trace_start"() <{level = 10 : i32, message = "bqk,bkd->bqd"}> : () -> ()
    %cst_9 = arith.constant dense<0.000000e+00> : vector<1x8x8xf32>
    %32 = tpu.matmul %31, %19, %cst_9 {dimension_numbers = #tpu.dot_dimension_numbers<[2], [1], [1], [2], [0, 0, 0, 1, 1, 2], [0], [0]>} : vector<1x8x8xbf16>, vector<1x8x8xbf16>, vector<1x8x8xf32> -> vector<1x8x8xf32>
    "tpu.trace_stop"() : () -> ()
    %33 = vector.shape_cast %32 : vector<1x8x8xf32> to vector<8x8xf32>
    %34 = vector.extract_strided_slice %11 {offsets = [0, 0, 8], sizes = [1, 8, 8], strides = [1, 1, 1]} : vector<1x8x128xf32> to vector<1x8x8xf32>
    %35 = arith.truncf %34 : vector<1x8x8xf32> to vector<1x8x8xbf16>
    %36 = vector.extract_strided_slice %12 {offsets = [0, 0, 8], sizes = [1, 8, 8], strides = [1, 1, 1]} : vector<1x8x128xf32> to vector<1x8x8xf32>
    %37 = arith.truncf %36 : vector<1x8x8xf32> to vector<1x8x8xbf16>
    %38 = vector.extract_strided_slice %13 {offsets = [0, 0, 8], sizes = [1, 8, 8], strides = [1, 1, 1]} : vector<1x8x128xf32> to vector<1x8x8xf32>
    %39 = arith.truncf %38 : vector<1x8x8xf32> to vector<1x8x8xbf16>
    "tpu.trace_start"() <{level = 10 : i32, message = "bqd,bkd->bqk"}> : () -> ()
    %cst_10 = arith.constant dense<0.000000e+00> : vector<1x8x8xf32>
    %40 = tpu.matmul %35, %37, %cst_10 {dimension_numbers = #tpu.dot_dimension_numbers<[2], [2], [1], [1], [0, 0, 0, 1, 1, 1], [0], [0]>} : vector<1x8x8xbf16>, vector<1x8x8xbf16>, vector<1x8x8xf32> -> vector<1x8x8xf32>
    "tpu.trace_stop"() : () -> ()
    %cst_11 = arith.constant dense<0xFF800000> : vector<1x8xf32>
    %41 = vector.multi_reduction <maximumf>, %40, %cst_11 [2] : vector<1x8x8xf32> to vector<1x8xf32>
    %42 = vector.shape_cast %41 : vector<1x8xf32> to vector<1x8x1xf32>
    %43 = vector.broadcast %42 : vector<1x8x1xf32> to vector<1x8x8xf32>
    %44 = arith.subf %40, %43 : vector<1x8x8xf32>
    %45 = math.exp %44 : vector<1x8x8xf32>
    %cst_12 = arith.constant dense<0.000000e+00> : vector<1x8xf32>
    %46 = vector.multi_reduction <add>, %45, %cst_12 [2] : vector<1x8x8xf32> to vector<1x8xf32>
    %47 = vector.shape_cast %46 : vector<1x8xf32> to vector<1x8x1xf32>
    %48 = tpu.reciprocal %47 {approx = true} : vector<1x8x1xf32> -> vector<1x8x1xf32>
    %49 = vector.broadcast %48 : vector<1x8x1xf32> to vector<1x8x8xf32>
    %50 = arith.mulf %45, %49 : vector<1x8x8xf32>
    %51 = arith.truncf %50 : vector<1x8x8xf32> to vector<1x8x8xbf16>
    "tpu.trace_start"() <{level = 10 : i32, message = "bqk,bkd->bqd"}> : () -> ()
    %cst_13 = arith.constant dense<0.000000e+00> : vector<1x8x8xf32>
    %52 = tpu.matmul %51, %39, %cst_13 {dimension_numbers = #tpu.dot_dimension_numbers<[2], [1], [1], [2], [0, 0, 0, 1, 1, 2], [0], [0]>} : vector<1x8x8xbf16>, vector<1x8x8xbf16>, vector<1x8x8xf32> -> vector<1x8x8xf32>
    "tpu.trace_stop"() : () -> ()
    %53 = vector.shape_cast %52 : vector<1x8x8xf32> to vector<8x8xf32>
    %54 = vector.extract_strided_slice %11 {offsets = [0, 0, 16], sizes = [1, 8, 8], strides = [1, 1, 1]} : vector<1x8x128xf32> to vector<1x8x8xf32>
    %55 = arith.truncf %54 : vector<1x8x8xf32> to vector<1x8x8xbf16>
    %56 = vector.extract_strided_slice %12 {offsets = [0, 0, 16], sizes = [1, 8, 8], strides = [1, 1, 1]} : vector<1x8x128xf32> to vector<1x8x8xf32>
    %57 = arith.truncf %56 : vector<1x8x8xf32> to vector<1x8x8xbf16>
    %58 = vector.extract_strided_slice %13 {offsets = [0, 0, 16], sizes = [1, 8, 8], strides = [1, 1, 1]} : vector<1x8x128xf32> to vector<1x8x8xf32>
    %59 = arith.truncf %58 : vector<1x8x8xf32> to vector<1x8x8xbf16>
    "tpu.trace_start"() <{level = 10 : i32, message = "bqd,bkd->bqk"}> : () -> ()
    %cst_14 = arith.constant dense<0.000000e+00> : vector<1x8x8xf32>
    %60 = tpu.matmul %55, %57, %cst_14 {dimension_numbers = #tpu.dot_dimension_numbers<[2], [2], [1], [1], [0, 0, 0, 1, 1, 1], [0], [0]>} : vector<1x8x8xbf16>, vector<1x8x8xbf16>, vector<1x8x8xf32> -> vector<1x8x8xf32>
    "tpu.trace_stop"() : () -> ()
    %cst_15 = arith.constant dense<0xFF800000> : vector<1x8xf32>
    %61 = vector.multi_reduction <maximumf>, %60, %cst_15 [2] : vector<1x8x8xf32> to vector<1x8xf32>
    %62 = vector.shape_cast %61 : vector<1x8xf32> to vector<1x8x1xf32>
    %63 = vector.broadcast %62 : vector<1x8x1xf32> to vector<1x8x8xf32>
    %64 = arith.subf %60, %63 : vector<1x8x8xf32>
    %65 = math.exp %64 : vector<1x8x8xf32>
    %cst_16 = arith.constant dense<0.000000e+00> : vector<1x8xf32>
    %66 = vector.multi_reduction <add>, %65, %cst_16 [2] : vector<1x8x8xf32> to vector<1x8xf32>
    %67 = vector.shape_cast %66 : vector<1x8xf32> to vector<1x8x1xf32>
    %68 = tpu.reciprocal %67 {approx = true} : vector<1x8x1xf32> -> vector<1x8x1xf32>
    %69 = vector.broadcast %68 : vector<1x8x1xf32> to vector<1x8x8xf32>
    %70 = arith.mulf %65, %69 : vector<1x8x8xf32>
    %71 = arith.truncf %70 : vector<1x8x8xf32> to vector<1x8x8xbf16>
    "tpu.trace_start"() <{level = 10 : i32, message = "bqk,bkd->bqd"}> : () -> ()
    %cst_17 = arith.constant dense<0.000000e+00> : vector<1x8x8xf32>
    %72 = tpu.matmul %71, %59, %cst_17 {dimension_numbers = #tpu.dot_dimension_numbers<[2], [1], [1], [2], [0, 0, 0, 1, 1, 2], [0], [0]>} : vector<1x8x8xbf16>, vector<1x8x8xbf16>, vector<1x8x8xf32> -> vector<1x8x8xf32>
    "tpu.trace_stop"() : () -> ()
    %73 = vector.shape_cast %72 : vector<1x8x8xf32> to vector<8x8xf32>
    %74 = vector.extract_strided_slice %11 {offsets = [0, 0, 24], sizes = [1, 8, 8], strides = [1, 1, 1]} : vector<1x8x128xf32> to vector<1x8x8xf32>
    %75 = arith.truncf %74 : vector<1x8x8xf32> to vector<1x8x8xbf16>
    %76 = vector.extract_strided_slice %12 {offsets = [0, 0, 24], sizes = [1, 8, 8], strides = [1, 1, 1]} : vector<1x8x128xf32> to vector<1x8x8xf32>
    %77 = arith.truncf %76 : vector<1x8x8xf32> to vector<1x8x8xbf16>
    %78 = vector.extract_strided_slice %13 {offsets = [0, 0, 24], sizes = [1, 8, 8], strides = [1, 1, 1]} : vector<1x8x128xf32> to vector<1x8x8xf32>
    %79 = arith.truncf %78 : vector<1x8x8xf32> to vector<1x8x8xbf16>
    "tpu.trace_start"() <{level = 10 : i32, message = "bqd,bkd->bqk"}> : () -> ()
    %cst_18 = arith.constant dense<0.000000e+00> : vector<1x8x8xf32>
    %80 = tpu.matmul %75, %77, %cst_18 {dimension_numbers = #tpu.dot_dimension_numbers<[2], [2], [1], [1], [0, 0, 0, 1, 1, 1], [0], [0]>} : vector<1x8x8xbf16>, vector<1x8x8xbf16>, vector<1x8x8xf32> -> vector<1x8x8xf32>
    "tpu.trace_stop"() : () -> ()
    %cst_19 = arith.constant dense<0xFF800000> : vector<1x8xf32>
    %81 = vector.multi_reduction <maximumf>, %80, %cst_19 [2] : vector<1x8x8xf32> to vector<1x8xf32>
    %82 = vector.shape_cast %81 : vector<1x8xf32> to vector<1x8x1xf32>
    %83 = vector.broadcast %82 : vector<1x8x1xf32> to vector<1x8x8xf32>
    %84 = arith.subf %80, %83 : vector<1x8x8xf32>
    %85 = math.exp %84 : vector<1x8x8xf32>
    %cst_20 = arith.constant dense<0.000000e+00> : vector<1x8xf32>
    %86 = vector.multi_reduction <add>, %85, %cst_20 [2] : vector<1x8x8xf32> to vector<1x8xf32>
    %87 = vector.shape_cast %86 : vector<1x8xf32> to vector<1x8x1xf32>
    %88 = tpu.reciprocal %87 {approx = true} : vector<1x8x1xf32> -> vector<1x8x1xf32>
    %89 = vector.broadcast %88 : vector<1x8x1xf32> to vector<1x8x8xf32>
    %90 = arith.mulf %85, %89 : vector<1x8x8xf32>
    %91 = arith.truncf %90 : vector<1x8x8xf32> to vector<1x8x8xbf16>
    "tpu.trace_start"() <{level = 10 : i32, message = "bqk,bkd->bqd"}> : () -> ()
    %cst_21 = arith.constant dense<0.000000e+00> : vector<1x8x8xf32>
    %92 = tpu.matmul %91, %79, %cst_21 {dimension_numbers = #tpu.dot_dimension_numbers<[2], [1], [1], [2], [0, 0, 0, 1, 1, 2], [0], [0]>} : vector<1x8x8xbf16>, vector<1x8x8xbf16>, vector<1x8x8xf32> -> vector<1x8x8xf32>
    "tpu.trace_stop"() : () -> ()
    %93 = vector.shape_cast %92 : vector<1x8x8xf32> to vector<8x8xf32>
    %cst_22 = arith.constant 0.000000e+00 : f32
    %94 = vector.broadcast %cst_22 : f32 to vector<8x96xf32>
    %95 = tpu.concatenate %33, %53, %73, %93, %94 in 1 : vector<8x8xf32>, vector<8x8xf32>, vector<8x8xf32>, vector<8x8xf32>, vector<8x96xf32> -> vector<8x128xf32>
    %96 = arith.truncf %95 : vector<8x128xf32> to vector<8x128xbf16>
    %c0_23 = arith.constant 0 : index
    %c0_24 = arith.constant 0 : index
    %97 = vector.load %arg4[%c0_23, %c0_24] : memref<128x128xbf16, #tpu.memory_space<vmem>>, vector<128x128xbf16>
    %cst_25 = arith.constant dense<0.000000e+00> : vector<8x128xf32>
    %98 = tpu.matmul %96, %97, %cst_25 {dimension_numbers = #tpu.dot_dimension_numbers<[1], [0], [0], [1], [0, 0, 1, 1], [], []>} : vector<8x128xbf16>, vector<128x128xbf16>, vector<8x128xf32> -> vector<8x128xf32>
    %c0_26 = arith.constant 0 : index
    %c0_27 = arith.constant 0 : index
    %99 = vector.load %arg5[%c0_26, %c0_27] : memref<1x128xf32, #tpu.memory_space<vmem>>, vector<1x128xf32>
    %100 = vector.broadcast %99 : vector<1x128xf32> to vector<8x128xf32>
    %101 = arith.addf %98, %100 : vector<8x128xf32>
    %102 = vector.shape_cast %101 : vector<8x128xf32> to vector<1x8x128xf32>
    %c0_28 = arith.constant 0 : index
    %c0_29 = arith.constant 0 : index
    %c0_30 = arith.constant 0 : index
    %103 = vector.load %arg1[%c0_28, %c0_29, %c0_30] : memref<1x8x128xf32, #tpu.memory_space<vmem>>, vector<1x8x128xf32>
    %104 = arith.addf %102, %103 : vector<1x8x128xf32>
    %c0_31 = arith.constant 0 : index
    %c0_32 = arith.constant 0 : index
    %c0_33 = arith.constant 0 : index
    %105 = vector.load %arg6[%c0_31, %c0_32, %c0_33] : memref<1x8x128xf32, #tpu.memory_space<vmem>>, vector<1x8x128xf32>
    tpu.vector_store %arg6[%c0_31, %c0_32, %c0_33], %104 {strides = array<i32>} : memref<1x8x128xf32, #tpu.memory_space<vmem>>, vector<1x8x128xf32>,
    return
  }
  func.func @transform_0(%arg0: i32) -> (i32, i32, i32) {
    %c0_i32 = arith.constant 0 : i32
    %c0_i32_0 = arith.constant 0 : i32
    %c0_i32_1 = arith.constant 0 : i32
    return %arg0, %c0_i32, %c0_i32_0 : i32, i32, i32
  }
  func.func @transform_1(%arg0: i32) -> (i32, i32) {
    %c0_i32 = arith.constant 0 : i32
    %c0_i32_0 = arith.constant 0 : i32
    %c0_i32_1 = arith.constant 0 : i32
    return %c0_i32, %c0_i32_0 : i32, i32
  }
  func.func @transform_2(%arg0: i32) -> (i32, i32) {
    %c0_i32 = arith.constant 0 : i32
    %c0_i32_0 = arith.constant 0 : i32
    %c0_i32_1 = arith.constant 0 : i32
    return %c0_i32, %c0_i32_0 : i32, i32
  }
  func.func @transform_3(%arg0: i32) -> (i32, i32) {
    %c0_i32 = arith.constant 0 : i32
    %c0_i32_0 = arith.constant 0 : i32
    %c0_i32_1 = arith.constant 0 : i32
    return %c0_i32, %c0_i32_0 : i32, i32
  }
  func.func @transform_4(%arg0: i32) -> (i32, i32) {
    %c0_i32 = arith.constant 0 : i32
    %c0_i32_0 = arith.constant 0 : i32
    %c0_i32_1 = arith.constant 0 : i32
    return %c0_i32, %c0_i32_0 : i32, i32
  }
  func.func @transform_5(%arg0: i32) -> (i32, i32, i32) {
    %c0_i32 = arith.constant 0 : i32
    %c0_i32_0 = arith.constant 0 : i32
    %c0_i32_1 = arith.constant 0 : i32
    return %arg0, %c0_i32, %c0_i32_0 : i32, i32, i32
  }
}

module attributes {stable_mosaic.version = 11 : i64} {
  func.func @_transformer_kernel(%arg0: i32, %arg1: memref<1x8x128xf32, #tpu.memory_space<vmem>>, %arg2: memref<128x384xbf16, #tpu.memory_space<vmem>>, %arg3: memref<1x384xf32, #tpu.memory_space<vmem>>, %arg4: memref<128x128xbf16, #tpu.memory_space<vmem>>, %arg5: memref<1x128xf32, #tpu.memory_space<vmem>>, %arg6: memref<1x8x128xf32, #tpu.memory_space<vmem>>) attributes {dimension_semantics = [#tpu.dimension_semantics<parallel>], iteration_bounds = array<i64: 2>, scalar_prefetch = 0 : i64, scratch_operands = 0 : i64, tpu.core_type = #tpu.core_type<tc>, window_params = [{transform_indices = @transform_0, window_bounds = array<i64: 1, 8, 128>}, {pipeline_mode = #tpu.pipeline_mode<synchronous>, transform_indices = @transform_1, window_bounds = array<i64: 128, 384>}, {pipeline_mode = #tpu.pipeline_mode<synchronous>, transform_indices = @transform_2, window_bounds = array<i64: 1, 384>}, {pipeline_mode = #tpu.pipeline_mode<synchronous>, transform_indices = @transform_3, window_bounds = array<i64: 128, 128>}, {pipeline_mode = #tpu.pipeline_mode<synchronous>, transform_indices = @transform_4, window_bounds = array<i64: 1, 128>}, {transform_indices = @transform_5, window_bounds = array<i64: 1, 8, 128>}]} {
    %c0 = arith.constant 0 : index
    %c0_0 = arith.constant 0 : index
    %c0_1 = arith.constant 0 : index
    %0 = vector.load %arg1[%c0, %c0_0, %c0_1] : memref<1x8x128xf32, #tpu.memory_space<vmem>>, vector<1x8x128xf32>
    %1 = vector.shape_cast %0 : vector<1x8x128xf32> to vector<8x128xf32>
    %2 = arith.truncf %1 : vector<8x128xf32> to vector<8x128xbf16>
    %c0_2 = arith.constant 0 : index
    %c0_3 = arith.constant 0 : index
    %3 = vector.load %arg2[%c0_2, %c0_3] : memref<128x384xbf16, #tpu.memory_space<vmem>>, vector<128x384xbf16>
    %cst = arith.constant dense<0.000000e+00> : vector<8x384xf32>
    %4 = tpu.matmul %2, %3, %cst {dimension_numbers = #tpu.dot_dimension_numbers<[1], [0], [0], [1], [0, 0, 1, 1], [], []>} : vector<8x128xbf16>, vector<128x384xbf16>, vector<8x384xf32> -> vector<8x384xf32>
    %c0_4 = arith.constant 0 : index
    %c0_5 = arith.constant 0 : index
    %5 = vector.load %arg3[%c0_4, %c0_5] : memref<1x384xf32, #tpu.memory_space<vmem>>, vector<1x384xf32>
    %6 = vector.broadcast %5 : vector<1x384xf32> to vector<8x384xf32>
    %7 = arith.addf %4, %6 : vector<8x384xf32>
    %8 = vector.extract_strided_slice %7 {offsets = [0, 0], sizes = [8, 128], strides = [1, 1]} : vector<8x384xf32> to vector<8x128xf32>
    %9 = vector.extract_strided_slice %7 {offsets = [0, 128], sizes = [8, 128], strides = [1, 1]} : vector<8x384xf32> to vector<8x128xf32>
    %10 = vector.extract_strided_slice %7 {offsets = [0, 256], sizes = [8, 128], strides = [1, 1]} : vector<8x384xf32> to vector<8x128xf32>
    %11 = vector.shape_cast %8 : vector<8x128xf32> to vector<1x8x128xf32>
    %12 = vector.shape_cast %9 : vector<8x128xf32> to vector<1x8x128xf32>
    %13 = vector.shape_cast %10 : vector<8x128xf32> to vector<1x8x128xf32>
    %14 = vector.extract_strided_slice %11 {offsets = [0, 0, 0], sizes = [1, 8, 8], strides = [1, 1, 1]} : vector<1x8x128xf32> to vector<1x8x8xf32>
    %15 = arith.truncf %14 : vector<1x8x8xf32> to vector<1x8x8xbf16>
    %16 = vector.extract_strided_slice %12 {offsets = [0, 0, 0], sizes = [1, 8, 8], strides = [1, 1, 1]} : vector<1x8x128xf32> to vector<1x8x8xf32>
    %17 = arith.truncf %16 : vector<1x8x8xf32> to vector<1x8x8xbf16>
    %18 = vector.extract_strided_slice %13 {offsets = [0, 0, 0], sizes = [1, 8, 8], strides = [1, 1, 1]} : vector<1x8x128xf32> to vector<1x8x8xf32>
    %19 = arith.truncf %18 : vector<1x8x8xf32> to vector<1x8x8xbf16>
    "tpu.trace_start"() <{level = 10 : i32, message = "bqd,bkd->bqk"}> : () -> ()
    %cst_6 = arith.constant dense<0.000000e+00> : vector<1x8x8xf32>
    %20 = tpu.matmul %15, %17, %cst_6 {dimension_numbers = #tpu.dot_dimension_numbers<[2], [2], [1], [1], [0, 0, 0, 1, 1, 1], [0], [0]>} : vector<1x8x8xbf16>, vector<1x8x8xbf16>, vector<1x8x8xf32> -> vector<1x8x8xf32>
    "tpu.trace_stop"() : () -> ()
    %cst_7 = arith.constant dense<0xFF800000> : vector<1x8xf32>
    %21 = vector.multi_reduction <maximumf>, %20, %cst_7 [2] : vector<1x8x8xf32> to vector<1x8xf32>
    %22 = vector.shape_cast %21 : vector<1x8xf32> to vector<1x8x1xf32>
    %23 = vector.broadcast %22 : vector<1x8x1xf32> to vector<1x8x8xf32>
    %24 = arith.subf %20, %23 : vector<1x8x8xf32>
    %25 = math.exp %24 : vector<1x8x8xf32>
    %cst_8 = arith.constant dense<0.000000e+00> : vector<1x8xf32>
    %26 = vector.multi_reduction <add>, %25, %cst_8 [2] : vector<1x8x8xf32> to vector<1x8xf32>
    %27 = vector.shape_cast %26 : vector<1x8xf32> to vector<1x8x1xf32>
    %28 = tpu.reciprocal %27 {approx = true} : vector<1x8x1xf32> -> vector<1x8x1xf32>
    %29 = vector.broadcast %28 : vector<1x8x1xf32> to vector<1x8x8xf32>
    %30 = arith.mulf %25, %29 : vector<1x8x8xf32>
    %31 = arith.truncf %30 : vector<1x8x8xf32> to vector<1x8x8xbf16>
    "tpu.trace_start"() <{level = 10 : i32, message = "bqk,bkd->bqd"}> : () -> ()
    %cst_9 = arith.constant dense<0.000000e+00> : vector<1x8x8xf32>
    %32 = tpu.matmul %31, %19, %cst_9 {dimension_numbers = #tpu.dot_dimension_numbers<[2], [1], [1], [2], [0, 0, 0, 1, 1, 2], [0], [0]>} : vector<1x8x8xbf16>, vector<1x8x8xbf16>, vector<1x8x8xf32> -> vector<1x8x8xf32>
    "tpu.trace_stop"() : () -> ()
    %33 = vector.shape_cast %32 : vector<1x8x8xf32> to vector<8x8xf32>
    %34 = vector.extract_strided_slice %11 {offsets = [0, 0, 8], sizes = [1, 8, 8], strides = [1, 1, 1]} : vector<1x8x128xf32> to vector<1x8x8xf32>
    %35 = arith.truncf %34 : vector<1x8x8xf32> to vector<1x8x8xbf16>
    %36 = vector.extract_strided_slice %12 {offsets = [0, 0, 8], sizes = [1, 8, 8], strides = [1, 1, 1]} : vector<1x8x128xf32> to vector<1x8x8xf32>
    %37 = arith.truncf %36 : vector<1x8x8xf32> to vector<1x8x8xbf16>
    %38 = vector.extract_strided_slice %13 {offsets = [0, 0, 8], sizes = [1, 8, 8], strides = [1, 1, 1]} : vector<1x8x128xf32> to vector<1x8x8xf32>
    %39 = arith.truncf %38 : vector<1x8x8xf32> to vector<1x8x8xbf16>
    "tpu.trace_start"() <{level = 10 : i32, message = "bqd,bkd->bqk"}> : () -> ()
    %cst_10 = arith.constant dense<0.000000e+00> : vector<1x8x8xf32>
    %40 = tpu.matmul %35, %37, %cst_10 {dimension_numbers = #tpu.dot_dimension_numbers<[2], [2], [1], [1], [0, 0, 0, 1, 1, 1], [0], [0]>} : vector<1x8x8xbf16>, vector<1x8x8xbf16>, vector<1x8x8xf32> -> vector<1x8x8xf32>
    "tpu.trace_stop"() : () -> ()
    %cst_11 = arith.constant dense<0xFF800000> : vector<1x8xf32>
    %41 = vector.multi_reduction <maximumf>, %40, %cst_11 [2] : vector<1x8x8xf32> to vector<1x8xf32>
    %42 = vector.shape_cast %41 : vector<1x8xf32> to vector<1x8x1xf32>
    %43 = vector.broadcast %42 : vector<1x8x1xf32> to vector<1x8x8xf32>
    %44 = arith.subf %40, %43 : vector<1x8x8xf32>
    %45 = math.exp %44 : vector<1x8x8xf32>
    %cst_12 = arith.constant dense<0.000000e+00> : vector<1x8xf32>
    %46 = vector.multi_reduction <add>, %45, %cst_12 [2] : vector<1x8x8xf32> to vector<1x8xf32>
    %47 = vector.shape_cast %46 : vector<1x8xf32> to vector<1x8x1xf32>
    %48 = tpu.reciprocal %47 {approx = true} : vector<1x8x1xf32> -> vector<1x8x1xf32>
    %49 = vector.broadcast %48 : vector<1x8x1xf32> to vector<1x8x8xf32>
    %50 = arith.mulf %45, %49 : vector<1x8x8xf32>
    %51 = arith.truncf %50 : vector<1x8x8xf32> to vector<1x8x8xbf16>
    "tpu.trace_start"() <{level = 10 : i32, message = "bqk,bkd->bqd"}> : () -> ()
    %cst_13 = arith.constant dense<0.000000e+00> : vector<1x8x8xf32>
    %52 = tpu.matmul %51, %39, %cst_13 {dimension_numbers = #tpu.dot_dimension_numbers<[2], [1], [1], [2], [0, 0, 0, 1, 1, 2], [0], [0]>} : vector<1x8x8xbf16>, vector<1x8x8xbf16>, vector<1x8x8xf32> -> vector<1x8x8xf32>
    "tpu.trace_stop"() : () -> ()
    %53 = vector.shape_cast %52 : vector<1x8x8xf32> to vector<8x8xf32>
    %54 = vector.extract_strided_slice %11 {offsets = [0, 0, 16], sizes = [1, 8, 8], strides = [1, 1, 1]} : vector<1x8x128xf32> to vector<1x8x8xf32>
    %55 = arith.truncf %54 : vector<1x8x8xf32> to vector<1x8x8xbf16>
    %56 = vector.extract_strided_slice %12 {offsets = [0, 0, 16], sizes = [1, 8, 8], strides = [1, 1, 1]} : vector<1x8x128xf32> to vector<1x8x8xf32>
    %57 = arith.truncf %56 : vector<1x8x8xf32> to vector<1x8x8xbf16>
    %58 = vector.extract_strided_slice %13 {offsets = [0, 0, 16], sizes = [1, 8, 8], strides = [1, 1, 1]} : vector<1x8x128xf32> to vector<1x8x8xf32>
    %59 = arith.truncf %58 : vector<1x8x8xf32> to vector<1x8x8xbf16>
    "tpu.trace_start"() <{level = 10 : i32, message = "bqd,bkd->bqk"}> : () -> ()
    %cst_14 = arith.constant dense<0.000000e+00> : vector<1x8x8xf32>
    %60 = tpu.matmul %55, %57, %cst_14 {dimension_numbers = #tpu.dot_dimension_numbers<[2], [2], [1], [1], [0, 0, 0, 1, 1, 1], [0], [0]>} : vector<1x8x8xbf16>, vector<1x8x8xbf16>, vector<1x8x8xf32> -> vector<1x8x8xf32>
    "tpu.trace_stop"() : () -> ()
    %cst_15 = arith.constant dense<0xFF800000> : vector<1x8xf32>
    %61 = vector.multi_reduction <maximumf>, %60, %cst_15 [2] : vector<1x8x8xf32> to vector<1x8xf32>
    %62 = vector.shape_cast %61 : vector<1x8xf32> to vector<1x8x1xf32>
    %63 = vector.broadcast %62 : vector<1x8x1xf32> to vector<1x8x8xf32>
    %64 = arith.subf %60, %63 : vector<1x8x8xf32>
    %65 = math.exp %64 : vector<1x8x8xf32>
    %cst_16 = arith.constant dense<0.000000e+00> : vector<1x8xf32>
    %66 = vector.multi_reduction <add>, %65, %cst_16 [2] : vector<1x8x8xf32> to vector<1x8xf32>
    %67 = vector.shape_cast %66 : vector<1x8xf32> to vector<1x8x1xf32>
    %68 = tpu.reciprocal %67 {approx = true} : vector<1x8x1xf32> -> vector<1x8x1xf32>
    %69 = vector.broadcast %68 : vector<1x8x1xf32> to vector<1x8x8xf32>
    %70 = arith.mulf %65, %69 : vector<1x8x8xf32>
    %71 = arith.truncf %70 : vector<1x8x8xf32> to vector<1x8x8xbf16>
    "tpu.trace_start"() <{level = 10 : i32, message = "bqk,bkd->bqd"}> : () -> ()
    %cst_17 = arith.constant dense<0.000000e+00> : vector<1x8x8xf32>
    %72 = tpu.matmul %71, %59, %cst_17 {dimension_numbers = #tpu.dot_dimension_numbers<[2], [1], [1], [2], [0, 0, 0, 1, 1, 2], [0], [0]>} : vector<1x8x8xbf16>, vector<1x8x8xbf16>, vector<1x8x8xf32> -> vector<1x8x8xf32>
    "tpu.trace_stop"() : () -> ()
    %73 = vector.shape_cast %72 : vector<1x8x8xf32> to vector<8x8xf32>
    %74 = vector.extract_strided_slice %11 {offsets = [0, 0, 24], sizes = [1, 8, 8], strides = [1, 1, 1]} : vector<1x8x128xf32> to vector<1x8x8xf32>
    %75 = arith.truncf %74 : vector<1x8x8xf32> to vector<1x8x8xbf16>
    %76 = vector.extract_strided_slice %12 {offsets = [0, 0, 24], sizes = [1, 8, 8], strides = [1, 1, 1]} : vector<1x8x128xf32> to vector<1x8x8xf32>
    %77 = arith.truncf %76 : vector<1x8x8xf32> to vector<1x8x8xbf16>
    %78 = vector.extract_strided_slice %13 {offsets = [0, 0, 24], sizes = [1, 8, 8], strides = [1, 1, 1]} : vector<1x8x128xf32> to vector<1x8x8xf32>
    %79 = arith.truncf %78 : vector<1x8x8xf32> to vector<1x8x8xbf16>
    "tpu.trace_start"() <{level = 10 : i32, message = "bqd,bkd->bqk"}> : () -> ()
    %cst_18 = arith.constant dense<0.000000e+00> : vector<1x8x8xf32>
    %80 = tpu.matmul %75, %77, %cst_18 {dimension_numbers = #tpu.dot_dimension_numbers<[2], [2], [1], [1], [0, 0, 0, 1, 1, 1], [0], [0]>} : vector<1x8x8xbf16>, vector<1x8x8xbf16>, vector<1x8x8xf32> -> vector<1x8x8xf32>
    "tpu.trace_stop"() : () -> ()
    %cst_19 = arith.constant dense<0xFF800000> : vector<1x8xf32>
    %81 = vector.multi_reduction <maximumf>, %80, %cst_19 [2] : vector<1x8x8xf32> to vector<1x8xf32>
    %82 = vector.shape_cast %81 : vector<1x8xf32> to vector<1x8x1xf32>
    %83 = vector.broadcast %82 : vector<1x8x1xf32> to vector<1x8x8xf32>
    %84 = arith.subf %80, %83 : vector<1x8x8xf32>
    %85 = math.exp %84 : vector<1x8x8xf32>
    %cst_20 = arith.constant dense<0.000000e+00> : vector<1x8xf32>
    %86 = vector.multi_reduction <add>, %85, %cst_20 [2] : vector<1x8x8xf32> to vector<1x8xf32>
    %87 = vector.shape_cast %86 : vector<1x8xf32> to vector<1x8x1xf32>
    %88 = tpu.reciprocal %87 {approx = true} : vector<1x8x1xf32> -> vector<1x8x1xf32>
    %89 = vector.broadcast %88 : vector<1x8x1xf32> to vector<1x8x8xf32>
    %90 = arith.mulf %85, %89 : vector<1x8x8xf32>
    %91 = arith.truncf %90 : vector<1x8x8xf32> to vector<1x8x8xbf16>
    "tpu.trace_start"() <{level = 10 : i32, message = "bqk,bkd->bqd"}> : () -> ()
    %cst_21 = arith.constant dense<0.000000e+00> : vector<1x8x8xf32>
    %92 = tpu.matmul %91, %79, %cst_21 {dimension_numbers = #tpu.dot_dimension_numbers<[2], [1], [1], [2], [0, 0, 0, 1, 1, 2], [0], [0]>} : vector<1x8x8xbf16>, vector<1x8x8xbf16>, vector<1x8x8xf32> -> vector<1x8x8xf32>
    "tpu.trace_stop"() : () -> ()
    %93 = vector.shape_cast %92 : vector<1x8x8xf32> to vector<8x8xf32>
    %cst_22 = arith.constant 0.000000e+00 : f32
    %94 = vector.broadcast %cst_22 : f32 to vector<8x96xf32>
    %95 = tpu.concatenate %33, %53, %73, %93, %94 in 1 : vector<8x8xf32>, vector<8x8xf32>, vector<8x8xf32>, vector<8x8xf32>, vector<8x96xf32> -> vector<8x128xf32>
    %96 = arith.truncf %95 : vector<8x128xf32> to vector<8x128xbf16>
    %c0_23 = arith.constant 0 : index
    %c0_24 = arith.constant 0 : index
    %97 = vector.load %arg4[%c0_23, %c0_24] : memref<128x128xbf16, #tpu.memory_space<vmem>>, vector<128x128xbf16>
    %cst_25 = arith.constant dense<0.000000e+00> : vector<8x128xf32>
    %98 = tpu.matmul %96, %97, %cst_25 {dimension_numbers = #tpu.dot_dimension_numbers<[1], [0], [0], [1], [0, 0, 1, 1], [], []>} : vector<8x128xbf16>, vector<128x128xbf16>, vector<8x128xf32> -> vector<8x128xf32>
    %c0_26 = arith.constant 0 : index
    %c0_27 = arith.constant 0 : index
    %99 = vector.load %arg5[%c0_26, %c0_27] : memref<1x128xf32, #tpu.memory_space<vmem>>, vector<1x128xf32>
    %100 = vector.broadcast %99 : vector<1x128xf32> to vector<8x128xf32>
    %101 = arith.addf %98, %100 : vector<8x128xf32>
    %102 = vector.shape_cast %101 : vector<8x128xf32> to vector<1x8x128xf32>
    %c0_28 = arith.constant 0 : index
    %c0_29 = arith.constant 0 : index
    %c0_30 = arith.constant 0 : index
    %103 = vector.load %arg1[%c0_28, %c0_29, %c0_30] : memref<1x8x128xf32, #tpu.memory_space<vmem>>, vector<1x8x128xf32>
    %104 = arith.addf %102, %103 : vector<1x8x128xf32>
    %c0_31 = arith.constant 0 : index
    %c0_32 = arith.constant 0 : index
    %c0_33 = arith.constant 0 : index
    %105 = vector.load %arg6[%c0_31, %c0_32, %c0_33] : memref<1x8x128xf32, #tpu.memory_space<vmem>>, vector<1x8x128xf32>
    tpu.vector_store %arg6[%c0_31, %c0_32, %c0_33], %104 {strides = array<i32>} : memref<1x8x128xf32, #tpu.memory_space<vmem>>, vector<1x8x128xf32>,
    return
  }
  func.func @transform_0(%arg0: i32) -> (i32, i32, i32) {
    %c0_i32 = arith.constant 0 : i32
    %c0_i32_0 = arith.constant 0 : i32
    %c0_i32_1 = arith.constant 0 : i32
    return %arg0, %c0_i32, %c0_i32_0 : i32, i32, i32
  }
  func.func @transform_1(%arg0: i32) -> (i32, i32) {
    %c0_i32 = arith.constant 0 : i32
    %c0_i32_0 = arith.constant 0 : i32
    %c0_i32_1 = arith.constant 0 : i32
    return %c0_i32, %c0_i32_0 : i32, i32
  }
  func.func @transform_2(%arg0: i32) -> (i32, i32) {
    %c0_i32 = arith.constant 0 : i32
    %c0_i32_0 = arith.constant 0 : i32
    %c0_i32_1 = arith.constant 0 : i32
    return %c0_i32, %c0_i32_0 : i32, i32
  }
  func.func @transform_3(%arg0: i32) -> (i32, i32) {
    %c0_i32 = arith.constant 0 : i32
    %c0_i32_0 = arith.constant 0 : i32
    %c0_i32_1 = arith.constant 0 : i32
    return %c0_i32, %c0_i32_0 : i32, i32
  }
  func.func @transform_4(%arg0: i32) -> (i32, i32) {
    %c0_i32 = arith.constant 0 : i32
    %c0_i32_0 = arith.constant 0 : i32
    %c0_i32_1 = arith.constant 0 : i32
    return %c0_i32, %c0_i32_0 : i32, i32
  }
  func.func @transform_5(%arg0: i32) -> (i32, i32, i32) {
    %c0_i32 = arith.constant 0 : i32
    %c0_i32_0 = arith.constant 0 : i32
    %c0_i32_1 = arith.constant 0 : i32
    return %arg0, %c0_i32, %c0_i32_0 : i32, i32, i32
  }
}

</mosaic_0001>

<llo_original>
// kernel: tpu_custom_call.1
$region0: #{tpu_custom_call.1}
  #allocation0 [shape = 'u32[]', space=smem, size = 0x4, offset = 0x4, fixed_abs, tag = 'smem constant byte address 0x4 - core index']
  #allocation1 [shape = 'u32[144,128]{1,0:T(1,128)}', space=vmem, size = 0x12000, scoped, tag = 'internal scratch']
  %s0 = inlined_call_operand.hbm [shape: f32[2,8,128], index: 0, kind: input, shape index: {}]
  %s1 = inlined_call_operand.hbm [shape: bf16[128,384], index: 1, kind: input, shape index: {}]
  %s2 = inlined_call_operand.vmem [shape: f32[1,384], index: 2, kind: input, shape index: {}]
  %s3 = inlined_call_operand.hbm [shape: bf16[128,128], index: 3, kind: input, shape index: {}]
  %s4 = inlined_call_operand.vmem [shape: f32[1,128], index: 4, kind: input, shape index: {}]
  %s5 = inlined_call_operand.hbm [shape: f32[2,8,128], index: 5, kind: output, shape index: {}]
  %s6 = sld [smem:[#allocation0]]
  $region65: #{tpu_custom_call.1} parent=0
    _
  %s8 = ssub.s32 1, %s6
  %s9 = scalar_select 0, %s8, %s6
  $region1: #{tpu_custom_call.1} parent=0
    #allocation2 [shape = 'u8[8192]{0}', space=vmem, size = 0x2000, scoped, tag = 'input window, operand 0']
    #allocation3 [shape = 's32[2]{0}', space=sflag, size = 0x8, scoped, tag = 'scoped memory for tpu_custom_call.1']
    #allocation4 [shape = 's32[2]{0}', space=sflag, size = 0x8, scoped, tag = 'scoped memory for tpu_custom_call.1']
    #allocation5 [shape = 'u8[98304]{0}', space=vmem, size = 0x18000, scoped, tag = 'input window, operand 1, single buffered']
    #allocation6 [shape = 's32[1]{0}', space=sflag, size = 0x4, scoped, tag = 'scoped memory for tpu_custom_call.1']
    #allocation7 [shape = 'u8[32768]{0}', space=vmem, size = 0x8000, scoped, tag = 'input window, operand 3, single buffered']
    #allocation8 [shape = 'u8[8192]{0}', space=vmem, size = 0x2000, scoped, tag = 'output window, operand 0']
    %10 = vsyncpa [#allocation3], 0
    %s11 = scalar_lea.sflag [#allocation3], 1
    %12 = vsyncpa %s11, 0
    %13 = vsyncpa [#allocation6], 0
    %14 = vsyncpa [#allocation4], 0
    %s15 = scalar_lea.sflag [#allocation4], 1
    %16 = vsyncpa %s15, 0
    loop: start=0, step=1, limit=4
    $region2: #{tpu_custom_call.1} parent=1 // loop_pre_header
      _
    $region3: #{tpu_custom_call.1} parent=1 // loop_header
      %s18 = sphi 0, %s22
      %p19 = scmp.ge.s32.totalorder %s18, 4
      %s28 = sphi 0, %s30
      %s31 = sphi 0, %s28
      %s32 = sphi 0, %s31
      %s48 = sphi 0, %s32
      %s52 = sphi 0, %s52
      %s54 = sphi 0, %s52
      %s55 = sphi 0, %s54
      %s69 = sphi 0, %s55
      %s73 = sphi 0, %s73
      %s75 = sphi 0, %s73
      %s76 = sphi 0, %s75
      %s90 = sphi 0, %s76
      %s94 = sphi 0, %s94
      %s96 = sphi 0, %s94
      %s97 = sphi 0, %s96
      %s111 = sphi 0, %s97
      %s115 = sphi 0, %s115
      %s117 = sphi 0, %s115
      %s118 = sphi 0, %s117
      %s132 = sphi 0, %s118
      %s138 = sphi 0, %s140
      %s141 = sphi 0, %s138
      %s142 = sphi 0, %s141
      %s158 = sphi 0, %s142
    $region4: #{tpu_custom_call.1} parent=1 // loop_header_branch
      %21 = sbr.rel (%p19) target = $region8
    $region5: #{tpu_custom_call.1} parent=1 // loop_body
      %s23 = ssub.s32 %s18, 1
      %s24 = ssub.s32 %s18, 2
      %s25 = sadd.s32 %s18, 1
      %s26 = ssub.s32 %s18, %s25
      %p27 = scmp.eq.s32.totalorder %s26, 0
      %s29 = sadd.s32 %s28, 1
      %s30 = scalar_select %p27, %s28, %s29
      %p33 = pneg %p27
      %p34 = scmp.eq.s32.totalorder %s18, 1
      %p35 = por %p33, %p34
      %p36 = scmp.ne.s32.totalorder %s28, %s31
      %p37 = scmp.eq.s32.totalorder %s18, 0
      %p38 = por %p36, %p37
      %p39 = scmp.ne.s32.totalorder %s28, %s31
      %p40 = scmp.eq.s32.totalorder %s23, 1
      %p41 = por %p39, %p40
      %p42 = scmp.ne.s32.totalorder %s31, %s32
      %p43 = scmp.eq.s32.totalorder %s23, 0
      %p44 = por %p42, %p43
      %p45 = scmp.ne.s32.totalorder %s31, %s32
      %p46 = scmp.eq.s32.totalorder %s24, 1
      %p47 = por %p45, %p46
      %p49 = scmp.ne.s32.totalorder %s32, %s48
      %p50 = scmp.eq.s32.totalorder %s24, 0
      %p51 = por %p49, %p50
      %s53 = sadd.s32 %s52, 1
      %p56 = scmp.eq.s32.totalorder %s18, 1
      %p57 = scmp.ne.s32.totalorder %s52, %s54
      %p58 = scmp.eq.s32.totalorder %s18, 0
      %p59 = por %p57, %p58
      %p60 = scmp.ne.s32.totalorder %s52, %s54
      %p61 = scmp.eq.s32.totalorder %s23, 1
      %p62 = por %p60, %p61
      %p63 = scmp.ne.s32.totalorder %s54, %s55
      %p64 = scmp.eq.s32.totalorder %s23, 0
      %p65 = por %p63, %p64
      %p66 = scmp.ne.s32.totalorder %s54, %s55
      %p67 = scmp.eq.s32.totalorder %s24, 1
      %p68 = por %p66, %p67
      %p70 = scmp.ne.s32.totalorder %s55, %s69
      %p71 = scmp.eq.s32.totalorder %s24, 0
      %p72 = por %p70, %p71
      %s74 = sadd.s32 %s73, 1
      %p77 = scmp.eq.s32.totalorder %s18, 1
      %p78 = scmp.ne.s32.totalorder %s73, %s75
      %p79 = scmp.eq.s32.totalorder %s18, 0
      %p80 = por %p78, %p79
      %p81 = scmp.ne.s32.totalorder %s73, %s75
      %p82 = scmp.eq.s32.totalorder %s23, 1
      %p83 = por %p81, %p82
      %p84 = scmp.ne.s32.totalorder %s75, %s76
      %p85 = scmp.eq.s32.totalorder %s23, 0
      %p86 = por %p84, %p85
      %p87 = scmp.ne.s32.totalorder %s75, %s76
      %p88 = scmp.eq.s32.totalorder %s24, 1
      %p89 = por %p87, %p88
      %p91 = scmp.ne.s32.totalorder %s76, %s90
      %p92 = scmp.eq.s32.totalorder %s24, 0
      %p93 = por %p91, %p92
      %s95 = sadd.s32 %s94, 1
      %p98 = scmp.eq.s32.totalorder %s18, 1
      %p99 = scmp.ne.s32.totalorder %s94, %s96
      %p100 = scmp.eq.s32.totalorder %s18, 0
      %p101 = por %p99, %p100
      %p102 = scmp.ne.s32.totalorder %s94, %s96
      %p103 = scmp.eq.s32.totalorder %s23, 1
      %p104 = por %p102, %p103
      %p105 = scmp.ne.s32.totalorder %s96, %s97
      %p106 = scmp.eq.s32.totalorder %s23, 0
      %p107 = por %p105, %p106
      %p108 = scmp.ne.s32.totalorder %s96, %s97
      %p109 = scmp.eq.s32.totalorder %s24, 1
      %p110 = por %p108, %p109
      %p112 = scmp.ne.s32.totalorder %s97, %s111
      %p113 = scmp.eq.s32.totalorder %s24, 0
      %p114 = por %p112, %p113
      %s116 = sadd.s32 %s115, 1
      %p119 = scmp.eq.s32.totalorder %s18, 1
      %p120 = scmp.ne.s32.totalorder %s115, %s117
      %p121 = scmp.eq.s32.totalorder %s18, 0
      %p122 = por %p120, %p121
      %p123 = scmp.ne.s32.totalorder %s115, %s117
      %p124 = scmp.eq.s32.totalorder %s23, 1
      %p125 = por %p123, %p124
      %p126 = scmp.ne.s32.totalorder %s117, %s118
      %p127 = scmp.eq.s32.totalorder %s23, 0
      %p128 = por %p126, %p127
      %p129 = scmp.ne.s32.totalorder %s117, %s118
      %p130 = scmp.eq.s32.totalorder %s24, 1
      %p131 = por %p129, %p130
      %p133 = scmp.ne.s32.totalorder %s118, %s132
      %p134 = scmp.eq.s32.totalorder %s24, 0
      %p135 = por %p133, %p134
      %s136 = ssub.s32 %s18, %s25
      %p137 = scmp.eq.s32.totalorder %s136, 0
      %s139 = sadd.s32 %s138, 1
      %s140 = scalar_select %p137, %s138, %s139
      %p143 = pneg %p137
      %p144 = scmp.eq.s32.totalorder %s18, 1
      %p145 = por %p143, %p144
      %p146 = scmp.ne.s32.totalorder %s138, %s141
      %p147 = scmp.eq.s32.totalorder %s18, 0
      %p148 = por %p146, %p147
      %p149 = scmp.ne.s32.totalorder %s138, %s141
      %p150 = scmp.eq.s32.totalorder %s23, 1
      %p151 = por %p149, %p150
      %p152 = scmp.ne.s32.totalorder %s141, %s142
      %p153 = scmp.eq.s32.totalorder %s23, 0
      %p154 = por %p152, %p153
      %p155 = scmp.ne.s32.totalorder %s141, %s142
      %p156 = scmp.eq.s32.totalorder %s24, 1
      %p157 = por %p155, %p156
      %p159 = scmp.ne.s32.totalorder %s142, %s158
      %p160 = scmp.eq.s32.totalorder %s24, 0
      %p161 = por %p159, %p160
      %p162 = scmp.le.s32.totalorder 1, %s18
      %p163 = scmp.lt.s32.totalorder %s18, 3
      %p164 = pnand %p162, %p163
      %p165 = pneg %p164
      // Predicated region
      $region9: #{tpu_custom_call.1} parent=5 // pred_check
        _
      $region10: #{tpu_custom_call.1} parent=5 // pred_check_branch
        %167 = sbr.rel (%p164) target = $region12
      $region11: #{tpu_custom_call.1} parent=5 // pred_region
        %s168 = ssub.s32 %s18, 1
        // Predicated region
        $region13: #{tpu_custom_call.1} parent=11 // pred_check
          %p169 = pneg %p65
        $region14: #{tpu_custom_call.1} parent=11 // pred_check_branch
          %171 = sbr.rel (%p169) target = $region16
        $region15: #{tpu_custom_call.1} parent=11 // pred_region
          %s173 = ssub.s32 3072, 3072
          %174 = vsyncadd [#allocation6], %s173
          %s175 = sshll.u32 [#allocation5], 4
          %s176 = int_to_ptr.vmem [resolvable:$true] %s175
          %181 = dma.hbm_to_vmem [thread:$0]  %s1, 3072, %s176, [#allocation6], 192, 192, 12
        $region16: #{tpu_custom_call.1} parent=11 // pred_fallthru
          _
        // Predicated region
        $region17: #{tpu_custom_call.1} parent=11 // pred_check
          %p182 = pneg %p86
        $region18: #{tpu_custom_call.1} parent=11 // pred_check_branch
          %184 = sbr.rel (%p182) target = $region20
        $region19: #{tpu_custom_call.1} parent=11 // pred_region
          _
        $region20: #{tpu_custom_call.1} parent=11 // pred_fallthru
          _
        // Predicated region
        $region21: #{tpu_custom_call.1} parent=11 // pred_check
          %p185 = pneg %p107
        $region22: #{tpu_custom_call.1} parent=11 // pred_check_branch
          %187 = sbr.rel (%p185) target = $region24
        $region23: #{tpu_custom_call.1} parent=11 // pred_region
          %s189 = ssub.s32 1024, 1024
          %190 = vsyncadd [#allocation6], %s189
          %s191 = sshll.u32 [#allocation7], 4
          %s192 = int_to_ptr.vmem [resolvable:$true] %s191
          %197 = dma.hbm_to_vmem [thread:$0]  %s3, 1024, %s192, [#allocation6], 64, 64, 4
        $region24: #{tpu_custom_call.1} parent=11 // pred_fallthru
          _
        // Predicated region
        $region25: #{tpu_custom_call.1} parent=11 // pred_check
          %p198 = pneg %p128
        $region26: #{tpu_custom_call.1} parent=11 // pred_check_branch
          %200 = sbr.rel (%p198) target = $region28
        $region27: #{tpu_custom_call.1} parent=11 // pred_region
          _
        $region28: #{tpu_custom_call.1} parent=11 // pred_fallthru
          _
      $region12: #{tpu_custom_call.1} parent=5 // pred_fallthru
        _
      %p201 = scmp.lt.s32.totalorder %s18, 2
      // Predicated region
      $region29: #{tpu_custom_call.1} parent=5 // pred_check
        %p202 = pneg %p201
      $region30: #{tpu_custom_call.1} parent=5 // pred_check_branch
        %204 = sbr.rel (%p202) target = $region32
      $region31: #{tpu_custom_call.1} parent=5 // pred_region
        // Predicated region
        $region33: #{tpu_custom_call.1} parent=31 // pred_check
          %p205 = pneg %p38
        $region34: #{tpu_custom_call.1} parent=31 // pred_check_branch
          %207 = sbr.rel (%p205) target = $region36
        $region35: #{tpu_custom_call.1} parent=31 // pred_region
          %s208 = sand.u32 %s28, 1
          %s209 = scalar_lea.sflag [#allocation3], %s208
          %s210 = sand.u32 %s28, 1
          %s211 = smul.addr %s210, 8
          %s212 = scalar_lea.vmem [#allocation2], %s211
          %s214 = ssub.s32 128, 128
          %215 = vsyncadd %s209, %s214
          %s216 = smul.addr %s18, 128
          %s217 = scalar_lea.hbm %s0, %s216
          %s219 = sshll.u32 %s212, 4
          %s220 = int_to_ptr.vmem [resolvable:$true] %s219
          %222 = dma.hbm_to_vmem [thread:$0]  %s217, 128, %s220, %s209
        $region36: #{tpu_custom_call.1} parent=31 // pred_fallthru
          _
      $region32: #{tpu_custom_call.1} parent=5 // pred_fallthru
        _
      %p223 = scmp.le.s32.totalorder 1, %s18
      %p224 = scmp.lt.s32.totalorder %s18, 3
      %p225 = pnand %p223, %p224
      %p226 = pneg %p225
      // Predicated region
      $region37: #{tpu_custom_call.1} parent=5 // pred_check
        _
      $region38: #{tpu_custom_call.1} parent=5 // pred_check_branch
        %228 = sbr.rel (%p225) target = $region40
      $region39: #{tpu_custom_call.1} parent=5 // pred_region
        %s229 = ssub.s32 %s18, 1
        %s230 = sand.u32 %s31, 1
        %s231 = scalar_lea.sflag [#allocation3], %s230
        %s232 = sand.u32 %s31, 1
        %s233 = smul.addr %s232, 8
        %s234 = scalar_lea.vmem [#allocation2], %s233
        // Predicated region
        $region41: #{tpu_custom_call.1} parent=39 // pred_check
          %p235 = pneg %p44
        $region42: #{tpu_custom_call.1} parent=39 // pred_check_branch
          %237 = sbr.rel (%p235) target = $region44
        $region43: #{tpu_custom_call.1} parent=39 // pred_region
          %238 = dma.done %s231, 128
        $region44: #{tpu_custom_call.1} parent=39 // pred_fallthru
          _
        // Predicated region
        $region45: #{tpu_custom_call.1} parent=39 // pred_check
          %p239 = pneg %p65
        $region46: #{tpu_custom_call.1} parent=39 // pred_check_branch
          %241 = sbr.rel (%p239) target = $region48
        $region47: #{tpu_custom_call.1} parent=39 // pred_region
          %242 = dma.done [#allocation6], 3072
        $region48: #{tpu_custom_call.1} parent=39 // pred_fallthru
          _
        // Predicated region
        $region49: #{tpu_custom_call.1} parent=39 // pred_check
          %p243 = pneg %p107
        $region50: #{tpu_custom_call.1} parent=39 // pred_check_branch
          %245 = sbr.rel (%p243) target = $region52
        $region51: #{tpu_custom_call.1} parent=39 // pred_region
          %246 = dma.done [#allocation6], 1024
        $region52: #{tpu_custom_call.1} parent=39 // pred_fallthru
          _
        %s247 = sand.u32 %s31, 1
        %s248 = scalar_lea.sflag [#allocation3], %s247
        %s249 = sand.u32 %s31, 1
        %s250 = smul.addr %s249, 8
        %s251 = scalar_lea.vmem [#allocation2], %s250
        %p252 = pneg %p44
        %p253 = pneg %p41
        %p254 = pneg %p65
        %p255 = pneg %p62
        %p256 = pneg %p86
        %p257 = pneg %p83
        %p258 = pneg %p107
        %p259 = pneg %p104
        %p260 = pneg %p128
        %p261 = pneg %p125
        %p262 = pneg %p154
        %p263 = pneg %p151
        %s264 = sand.u32 %s141, 1
        %s265 = scalar_lea.sflag [#allocation4], %s264
        %s266 = sand.u32 %s141, 1
        %s267 = smul.addr %s266, 8
        %s268 = scalar_lea.vmem [#allocation8], %s267
        %v270 = vld [vmem:[%s234] sm:$0xff]
        %v271 = vpack.c.bf16 %v270, %v270
        %v272 = vld [vmem:[#allocation5] sm:$0xff]
        %v273 = vld [vmem:[#allocation5 + $0x8] sm:$0xf]
        %v274 = vld [vmem:[#allocation5 + $0xc] sm:$0xff]
        %v275 = vld [vmem:[#allocation5 + $0x14] sm:$0xf]
        %v276 = vld [vmem:[#allocation5 + $0x18] sm:$0xff]
        %v277 = vld [vmem:[#allocation5 + $0x20] sm:$0xf]
        %v278 = vld [vmem:[#allocation5 + $0x24] sm:$0xff]
        %v279 = vld [vmem:[#allocation5 + $0x2c] sm:$0xf]
        %v280 = vld [vmem:[#allocation5 + $0x30] sm:$0xff]
        %v281 = vld [vmem:[#allocation5 + $0x38] sm:$0xf]
        %v282 = vld [vmem:[#allocation5 + $0x3c] sm:$0xff]
        %v283 = vld [vmem:[#allocation5 + $0x44] sm:$0xf]
        %v284 = vld [vmem:[#allocation5 + $0x48] sm:$0xff]
        %v285 = vld [vmem:[#allocation5 + $0x50] sm:$0xf]
        %v286 = vld [vmem:[#allocation5 + $0x54] sm:$0xff]
        %v287 = vld [vmem:[#allocation5 + $0x5c] sm:$0xf]
        %v288 = vld [vmem:[#allocation5 + $0x60] sm:$0xff]
        %v289 = vld [vmem:[#allocation5 + $0x68] sm:$0xf]
        %v290 = vld [vmem:[#allocation5 + $0x6c] sm:$0xff]
        %v291 = vld [vmem:[#allocation5 + $0x74] sm:$0xf]
        %v292 = vld [vmem:[#allocation5 + $0x78] sm:$0xff]
        %v293 = vld [vmem:[#allocation5 + $0x80] sm:$0xf]
        %v294 = vld [vmem:[#allocation5 + $0x84] sm:$0xff]
        %v295 = vld [vmem:[#allocation5 + $0x8c] sm:$0xf]
        %v296 = vld [vmem:[#allocation5 + $0x90] sm:$0xff]
        %v297 = vld [vmem:[#allocation5 + $0x98] sm:$0xf]
        %v298 = vld [vmem:[#allocation5 + $0x9c] sm:$0xff]
        %v299 = vld [vmem:[#allocation5 + $0xa4] sm:$0xf]
        %v300 = vld [vmem:[#allocation5 + $0xa8] sm:$0xff]
        %v301 = vld [vmem:[#allocation5 + $0xb0] sm:$0xf]
        %v302 = vld [vmem:[#allocation5 + $0xb4] sm:$0xff]
        %v303 = vld [vmem:[#allocation5 + $0xbc] sm:$0xf]
        %v304 = vld [vmem:[%s2] sm:$0x7]
        %v306 = vlaneseq
        %v307 = vshrl.u32 %v306, 7
        %v308 = vsub.s32 0, %v307
        %v309 = vrot.slane %v304, %v308
        %v310 = vlaneseq
        %v311 = vshrl.u32 %v310, 7
        %v312 = vsub.s32 1, %v311
        %v313 = vrot.slane %v304, %v312
        %v314 = vlaneseq
        %v315 = vshrl.u32 %v314, 7
        %v316 = vsub.s32 2, %v315
        %v317 = vrot.slane %v304, %v316
        %v353 = vunpack.c.l.b16 %v272
        %v354 = vunpack.c.h.b16 %v272
        %v355 = vunpack.c.l.b16 %v273
        %v356 = vunpack.c.l.b16 %v274
        %v357 = vunpack.c.h.b16 %v274
        %v358 = vunpack.c.l.b16 %v275
        %v359 = vunpack.c.l.b16 %v276
        %v360 = vunpack.c.h.b16 %v276
        %v361 = vunpack.c.l.b16 %v277
        %v362 = vunpack.c.l.b16 %v278
        %v363 = vunpack.c.h.b16 %v278
        %v364 = vunpack.c.l.b16 %v279
        %v365 = vunpack.c.l.b16 %v280
        %v366 = vunpack.c.h.b16 %v280
        %v367 = vunpack.c.l.b16 %v281
        %v368 = vunpack.c.l.b16 %v282
        %v369 = vunpack.c.h.b16 %v282
        %v370 = vunpack.c.l.b16 %v283
        %v371 = vunpack.c.l.b16 %v284
        %v372 = vunpack.c.h.b16 %v284
        %v373 = vunpack.c.l.b16 %v285
        %v374 = vunpack.c.l.b16 %v286
        %v375 = vunpack.c.h.b16 %v286
        %v376 = vunpack.c.l.b16 %v287
        %v377 = vunpack.c.l.b16 %v288
        %v378 = vunpack.c.h.b16 %v288
        %v379 = vunpack.c.l.b16 %v289
        %v380 = vunpack.c.l.b16 %v290
        %v381 = vunpack.c.h.b16 %v290
        %v382 = vunpack.c.l.b16 %v291
        %v383 = vunpack.c.l.b16 %v292
        %v384 = vunpack.c.h.b16 %v292
        %v385 = vunpack.c.l.b16 %v293
        %v386 = vunpack.c.l.b16 %v294
        %v387 = vunpack.c.h.b16 %v294
        %v388 = vunpack.c.l.b16 %v295
        %v389 = vunpack.c.l.b16 %v296
        %v390 = vunpack.c.h.b16 %v296
        %v391 = vunpack.c.l.b16 %v297
        %v392 = vunpack.c.l.b16 %v298
        %v393 = vunpack.c.h.b16 %v298
        %v394 = vunpack.c.l.b16 %v299
        %v395 = vunpack.c.l.b16 %v300
        %v396 = vunpack.c.h.b16 %v300
        %v397 = vunpack.c.l.b16 %v301
        %v398 = vunpack.c.l.b16 %v302
        %v399 = vunpack.c.h.b16 %v302
        %v400 = vunpack.c.l.b16 %v303
        %v401 = vpack.c.b16 %v356, %v353
        %v402 = vpack.c.b16 %v357, %v354
        %v403 = vpack.c.b16 %v358, %v355
        %v404 = vpack.c.b16 %v362, %v359
        %v405 = vpack.c.b16 %v363, %v360
        %v406 = vpack.c.b16 %v364, %v361
        %v407 = vpack.c.b16 %v368, %v365
        %v408 = vpack.c.b16 %v369, %v366
        %v409 = vpack.c.b16 %v370, %v367
        %v410 = vpack.c.b16 %v374, %v371
        %v411 = vpack.c.b16 %v375, %v372
        %v412 = vpack.c.b16 %v376, %v373
        %v413 = vpack.c.b16 %v380, %v377
        %v414 = vpack.c.b16 %v381, %v378
        %v415 = vpack.c.b16 %v382, %v379
        %v416 = vpack.c.b16 %v386, %v383
        %v417 = vpack.c.b16 %v387, %v384
        %v418 = vpack.c.b16 %v388, %v385
        %v419 = vpack.c.b16 %v392, %v389
        %v420 = vpack.c.b16 %v393, %v390
        %v421 = vpack.c.b16 %v394, %v391
        %v422 = vpack.c.b16 %v398, %v395
        %v423 = vpack.c.b16 %v399, %v396
        %v424 = vpack.c.b16 %v400, %v397
        %449 = vmatprep.subr.bf16.mxu0 %v402
        %450 = vmatpush1.bf16.msra.mxu0 %v401
        %451 = vmatprep.subr.bf16.mxu0 %v405
        %452 = vmatpush1.bf16.msra.mxu0 %v404
        %453 = vmatprep.subr.bf16.mxu0 %v408
        %454 = vmatpush1.bf16.msra.mxu0 %v407
        %455 = vmatprep.subr.bf16.mxu0 %v411
        %456 = vmatpush1.bf16.msra.mxu0 %v410
        %457 = vmatprep.subr.bf16.mxu0 %v414
        %458 = vmatpush1.bf16.msra.mxu0 %v413
        %459 = vmatprep.subr.bf16.mxu0 %v417
        %460 = vmatpush1.bf16.msra.mxu0 %v416
        %461 = vmatprep.subr.bf16.mxu0 %v420
        %462 = vmatpush1.bf16.msra.mxu0 %v419
        %463 = vmatprep.subr.bf16.mxu0 %v423
        %464 = vmatpush1.bf16.msra.mxu0 %v422
        %465 = vmatprep.subr.bf16.mxu0 0
        %466 = vmatpush1.bf16.msra.mxu0 0
        %467 = vmatprep.subr.bf16.mxu0 0
        %468 = vmatpush1.bf16.msra.mxu0 0
        %469 = vmatprep.subr.bf16.mxu0 0
        %470 = vmatpush1.bf16.msra.mxu0 0
        %471 = vmatprep.subr.bf16.mxu0 0
        %472 = vmatpush1.bf16.msra.mxu0 0
        %473 = vmatprep.subr.bf16.mxu0 0
        %474 = vmatpush1.bf16.msra.mxu0 0
        %475 = vmatprep.subr.bf16.mxu0 0
        %476 = vmatpush1.bf16.msra.mxu0 0
        %477 = vmatprep.subr.bf16.mxu0 0
        %478 = vmatpush1.bf16.msra.mxu0 0
        %479 = vmatprep.subr.bf16.mxu0 0
        %480 = vmatpush1.bf16.msra.mxu0 0
        %481 = vmatprep.mubr.bf16.mxu0 0
        %482 = vmatmul.mubr.bf16.gmra.mrb[0].mxu0 %v271
        %v483 = vpop.f32.mrb[0].mxu0
        %v484 = vadd.f32 %v309, %v483
        %v485 = vpop.f32.mrb[0].mxu0
        %v486 = vadd.f32 %v313, %v485
        %v487 = vpop.f32.mrb[0].mxu0
        %v488 = vpop.f32.mrb[0].mxu0
        %489 = vdwg.mxu0
        %490 = vmatprep.subr.bf16.mxu0 0
        %491 = vmatpush1.bf16.msra.mxu0 %v403
        %492 = vmatprep.subr.bf16.mxu0 0
        %493 = vmatpush1.bf16.msra.mxu0 %v406
        %494 = vmatprep.subr.bf16.mxu0 0
        %495 = vmatpush1.bf16.msra.mxu0 %v409
        %496 = vmatprep.subr.bf16.mxu0 0
        %497 = vmatpush1.bf16.msra.mxu0 %v412
        %498 = vmatprep.subr.bf16.mxu0 0
        %499 = vmatpush1.bf16.msra.mxu0 %v415
        %500 = vmatprep.subr.bf16.mxu0 0
        %501 = vmatpush1.bf16.msra.mxu0 %v418
        %502 = vmatprep.subr.bf16.mxu0 0
        %503 = vmatpush1.bf16.msra.mxu0 %v421
        %504 = vmatprep.subr.bf16.mxu0 0
        %505 = vmatpush1.bf16.msra.mxu0 %v424
        %506 = vmatprep.subr.bf16.mxu0 0
        %507 = vmatpush1.bf16.msra.mxu0 0
        %508 = vmatprep.subr.bf16.mxu0 0
        %509 = vmatpush1.bf16.msra.mxu0 0
        %510 = vmatprep.subr.bf16.mxu0 0
        %511 = vmatpush1.bf16.msra.mxu0 0
        %512 = vmatprep.subr.bf16.mxu0 0
        %513 = vmatpush1.bf16.msra.mxu0 0
        %514 = vmatprep.subr.bf16.mxu0 0
        %515 = vmatpush1.bf16.msra.mxu0 0
        %516 = vmatprep.subr.bf16.mxu0 0
        %517 = vmatpush1.bf16.msra.mxu0 0
        %518 = vmatprep.subr.bf16.mxu0 0
        %519 = vmatpush1.bf16.msra.mxu0 0
        %520 = vmatprep.subr.bf16.mxu0 0
        %521 = vmatpush1.bf16.msra.mxu0 0
        %522 = vmatprep.mubr.bf16.mxu0 0
        %523 = vmatmul.mubr.bf16.gmra.mrb[0].mxu0 %v271
        %v524 = vpop.f32.mrb[0].mxu0
        %v525 = vadd.f32 %v317, %v524
        %v526 = vpop.f32.mrb[0].mxu0
        %v527 = vpop.f32.mrb[0].mxu0
        %v528 = vpop.f32.mrb[0].mxu0
        %529 = vdwg.mxu0
        %v530 = vpack.c.bf16 %v484, %v484
        %v531 = vpack.c.bf16 %v486, %v486
        %v532 = vpack.c.bf16 %v525, %v525
        %vm533 = vcmask 64512
        %v535 = vsel %vm533, %v530, 0
        %v538 = vsel %vm533, %v531, 0
        %540 = vmatprep.subr.bf16.mxu0 0
        %541 = vmatpush1.bf16.xpose.msra.mxu0 %v538
        %542 = vmatprep.subr.bf16.mxu0 0
        %543 = vmatpush1.bf16.xpose.msra.mxu0 0
        %544 = vmatprep.subr.bf16.mxu0 0
        %545 = vmatpush1.bf16.xpose.msra.mxu0 0
        %546 = vmatprep.subr.bf16.mxu0 0
        %547 = vmatpush1.bf16.xpose.msra.mxu0 0
        %548 = vmatprep.subr.bf16.mxu0 0
        %549 = vmatpush1.bf16.xpose.msra.mxu0 0
        %550 = vmatprep.subr.bf16.mxu0 0
        %551 = vmatpush1.bf16.xpose.msra.mxu0 0
        %552 = vmatprep.subr.bf16.mxu0 0
        %553 = vmatpush1.bf16.xpose.msra.mxu0 0
        %554 = vmatprep.subr.bf16.mxu0 0
        %555 = vmatpush1.bf16.xpose.msra.mxu0 0
        %556 = vmatprep.subr.bf16.mxu0 0
        %557 = vmatpush1.bf16.xpose.msra.mxu0 0
        %558 = vmatprep.subr.bf16.mxu0 0
        %559 = vmatpush1.bf16.xpose.msra.mxu0 0
        %560 = vmatprep.subr.bf16.mxu0 0
        %561 = vmatpush1.bf16.xpose.msra.mxu0 0
        %562 = vmatprep.subr.bf16.mxu0 0
        %563 = vmatpush1.bf16.xpose.msra.mxu0 0
        %564 = vmatprep.subr.bf16.mxu0 0
        %565 = vmatpush1.bf16.xpose.msra.mxu0 0
        %566 = vmatprep.subr.bf16.mxu0 0
        %567 = vmatpush1.bf16.xpose.msra.mxu0 0
        %568 = vmatprep.subr.bf16.mxu0 0
        %569 = vmatpush1.bf16.xpose.msra.mxu0 0
        %570 = vmatprep.subr.bf16.mxu0 0
        %571 = vmatpush1.bf16.xpose.msra.mxu0 0
        %572 = vmatprep.mubr.bf16.mxu0 0
        %573 = vmatmul.mubr.bf16.gmra.mrb[0].mxu0 %v535
        %v574 = vpop.f32.mrb[0].mxu0
        %v575 = vadd.f32 0.0, %v574
        %v576 = vpop.f32.mrb[0].mxu0
        %v577 = vpop.f32.mrb[0].mxu0
        %v578 = vpop.f32.mrb[0].mxu0
        %579 = vdwg.mxu0
        %v580 = vsel %vm533, %v575, -inf
        %581 = vmax.xlane.f32.xlu0 %v580
        %v582 = vpop.xlane.xlu0 %581
        %v583 = vsub.f32 %v575, %v582
        %v584 = vmul.f32 %v583, 1.442695
        %v585 = vpow.pop %v584
        %v586 = vsel %vm533, %v585, 0.0
        %587 = vadd.xlane.f32.xlu0 %v586
        %v588 = vpop.xlane.xlu0 %587
        %v589 = vrcp.pop %v588
        %v590 = vmul.f32 %v585, %v589
        %v591 = vpack.c.bf16 %v590, %v590
        %v593 = vsel %vm533, %v591, 0
        %vm595 = vcmask 1043456
        %v597 = vsel %vm595, %v532, 0
        %599 = vmatprep.subr.bf16.mxu0 0
        %600 = vmatpush1.bf16.msra.mxu0 %v597
        %601 = vmatprep.subr.bf16.mxu0 0
        %602 = vmatpush1.bf16.msra.mxu0 0
        %603 = vmatprep.subr.bf16.mxu0 0
        %604 = vmatpush1.bf16.msra.mxu0 0
        %605 = vmatprep.subr.bf16.mxu0 0
        %606 = vmatpush1.bf16.msra.mxu0 0
        %607 = vmatprep.subr.bf16.mxu0 0
        %608 = vmatpush1.bf16.msra.mxu0 0
        %609 = vmatprep.subr.bf16.mxu0 0
        %610 = vmatpush1.bf16.msra.mxu0 0
        %611 = vmatprep.subr.bf16.mxu0 0
        %612 = vmatpush1.bf16.msra.mxu0 0
        %613 = vmatprep.subr.bf16.mxu0 0
        %614 = vmatpush1.bf16.msra.mxu0 0
        %615 = vmatprep.subr.bf16.mxu0 0
        %616 = vmatpush1.bf16.msra.mxu0 0
        %617 = vmatprep.subr.bf16.mxu0 0
        %618 = vmatpush1.bf16.msra.mxu0 0
        %619 = vmatprep.subr.bf16.mxu0 0
        %620 = vmatpush1.bf16.msra.mxu0 0
        %621 = vmatprep.subr.bf16.mxu0 0
        %622 = vmatpush1.bf16.msra.mxu0 0
        %623 = vmatprep.subr.bf16.mxu0 0
        %624 = vmatpush1.bf16.msra.mxu0 0
        %625 = vmatprep.subr.bf16.mxu0 0
        %626 = vmatpush1.bf16.msra.mxu0 0
        %627 = vmatprep.subr.bf16.mxu0 0
        %628 = vmatpush1.bf16.msra.mxu0 0
        %629 = vmatprep.subr.bf16.mxu0 0
        %630 = vmatpush1.bf16.msra.mxu0 0
        %631 = vmatprep.mubr.bf16.mxu0 0
        %632 = vmatmul.mubr.bf16.gmra.mrb[0].mxu0 %v593
        %v633 = vpop.f32.mrb[0].mxu0
        %v634 = vadd.f32 0.0, %v633
        %v635 = vpop.f32.mrb[0].mxu0
        %v636 = vpop.f32.mrb[0].mxu0
        %v637 = vpop.f32.mrb[0].mxu0
        %638 = vdwg.mxu0
        %640 = vrot.lane.b32.xlu0 %v530, 120
        %v641 = vpop.permute.xlu0 %640
        %643 = vrot.lane.b32.xlu0 %v531, 120
        %v644 = vpop.permute.xlu0 %643
        %v646 = vsel %vm533, %v641, 0
        %v649 = vsel %vm533, %v644, 0
        %651 = vmatprep.subr.bf16.mxu0 0
        %652 = vmatpush1.bf16.xpose.msra.mxu0 %v649
        %653 = vmatprep.subr.bf16.mxu0 0
        %654 = vmatpush1.bf16.xpose.msra.mxu0 0
        %655 = vmatprep.subr.bf16.mxu0 0
        %656 = vmatpush1.bf16.xpose.msra.mxu0 0
        %657 = vmatprep.subr.bf16.mxu0 0
        %658 = vmatpush1.bf16.xpose.msra.mxu0 0
        %659 = vmatprep.subr.bf16.mxu0 0
        %660 = vmatpush1.bf16.xpose.msra.mxu0 0
        %661 = vmatprep.subr.bf16.mxu0 0
        %662 = vmatpush1.bf16.xpose.msra.mxu0 0
        %663 = vmatprep.subr.bf16.mxu0 0
        %664 = vmatpush1.bf16.xpose.msra.mxu0 0
        %665 = vmatprep.subr.bf16.mxu0 0
        %666 = vmatpush1.bf16.xpose.msra.mxu0 0
        %667 = vmatprep.subr.bf16.mxu0 0
        %668 = vmatpush1.bf16.xpose.msra.mxu0 0
        %669 = vmatprep.subr.bf16.mxu0 0
        %670 = vmatpush1.bf16.xpose.msra.mxu0 0
        %671 = vmatprep.subr.bf16.mxu0 0
        %672 = vmatpush1.bf16.xpose.msra.mxu0 0
        %673 = vmatprep.subr.bf16.mxu0 0
        %674 = vmatpush1.bf16.xpose.msra.mxu0 0
        %675 = vmatprep.subr.bf16.mxu0 0
        %676 = vmatpush1.bf16.xpose.msra.mxu0 0
        %677 = vmatprep.subr.bf16.mxu0 0
        %678 = vmatpush1.bf16.xpose.msra.mxu0 0
        %679 = vmatprep.subr.bf16.mxu0 0
        %680 = vmatpush1.bf16.xpose.msra.mxu0 0
        %681 = vmatprep.subr.bf16.mxu0 0
        %682 = vmatpush1.bf16.xpose.msra.mxu0 0
        %683 = vmatprep.mubr.bf16.mxu0 0
        %684 = vmatmul.mubr.bf16.gmra.mrb[0].mxu0 %v646
        %v685 = vpop.f32.mrb[0].mxu0
        %v686 = vadd.f32 0.0, %v685
        %v687 = vpop.f32.mrb[0].mxu0
        %v688 = vpop.f32.mrb[0].mxu0
        %v689 = vpop.f32.mrb[0].mxu0
        %690 = vdwg.mxu0
        %v691 = vsel %vm533, %v686, -inf
        %692 = vmax.xlane.f32.xlu0 %v691
        %v693 = vpop.xlane.xlu0 %692
        %v694 = vsub.f32 %v686, %v693
        %v695 = vmul.f32 %v694, 1.442695
        %v696 = vpow.pop %v695
        %v697 = vsel %vm533, %v696, 0.0
        %698 = vadd.xlane.f32.xlu0 %v697
        %v699 = vpop.xlane.xlu0 %698
        %v700 = vrcp.pop %v699
        %v701 = vmul.f32 %v696, %v700
        %v702 = vpack.c.bf16 %v701, %v701
        %704 = vrot.lane.b32.xlu0 %v532, 120
        %v705 = vpop.permute.xlu0 %704
        %v707 = vsel %vm533, %v702, 0
        %v710 = vsel %vm595, %v705, 0
        %712 = vmatprep.subr.bf16.mxu0 0
        %713 = vmatpush1.bf16.msra.mxu0 %v710
        %714 = vmatprep.subr.bf16.mxu0 0
        %715 = vmatpush1.bf16.msra.mxu0 0
        %716 = vmatprep.subr.bf16.mxu0 0
        %717 = vmatpush1.bf16.msra.mxu0 0
        %718 = vmatprep.subr.bf16.mxu0 0
        %719 = vmatpush1.bf16.msra.mxu0 0
        %720 = vmatprep.subr.bf16.mxu0 0
        %721 = vmatpush1.bf16.msra.mxu0 0
        %722 = vmatprep.subr.bf16.mxu0 0
        %723 = vmatpush1.bf16.msra.mxu0 0
        %724 = vmatprep.subr.bf16.mxu0 0
        %725 = vmatpush1.bf16.msra.mxu0 0
        %726 = vmatprep.subr.bf16.mxu0 0
        %727 = vmatpush1.bf16.msra.mxu0 0
        %728 = vmatprep.subr.bf16.mxu0 0
        %729 = vmatpush1.bf16.msra.mxu0 0
        %730 = vmatprep.subr.bf16.mxu0 0
        %731 = vmatpush1.bf16.msra.mxu0 0
        %732 = vmatprep.subr.bf16.mxu0 0
        %733 = vmatpush1.bf16.msra.mxu0 0
        %734 = vmatprep.subr.bf16.mxu0 0
        %735 = vmatpush1.bf16.msra.mxu0 0
        %736 = vmatprep.subr.bf16.mxu0 0
        %737 = vmatpush1.bf16.msra.mxu0 0
        %738 = vmatprep.subr.bf16.mxu0 0
        %739 = vmatpush1.bf16.msra.mxu0 0
        %740 = vmatprep.subr.bf16.mxu0 0
        %741 = vmatpush1.bf16.msra.mxu0 0
        %742 = vmatprep.subr.bf16.mxu0 0
        %743 = vmatpush1.bf16.msra.mxu0 0
        %744 = vmatprep.mubr.bf16.mxu0 0
        %745 = vmatmul.mubr.bf16.gmra.mrb[0].mxu0 %v707
        %v746 = vpop.f32.mrb[0].mxu0
        %v747 = vadd.f32 0.0, %v746
        %v748 = vpop.f32.mrb[0].mxu0
        %v749 = vpop.f32.mrb[0].mxu0
        %v750 = vpop.f32.mrb[0].mxu0
        %751 = vdwg.mxu0
        %752 = vrot.lane.b32.xlu0 %v530, 112
        %v753 = vpop.permute.xlu0 %752
        %754 = vrot.lane.b32.xlu0 %v531, 112
        %v755 = vpop.permute.xlu0 %754
        %v757 = vsel %vm533, %v753, 0
        %v760 = vsel %vm533, %v755, 0
        %762 = vmatprep.subr.bf16.mxu0 0
        %763 = vmatpush1.bf16.xpose.msra.mxu0 %v760
        %764 = vmatprep.subr.bf16.mxu0 0
        %765 = vmatpush1.bf16.xpose.msra.mxu0 0
        %766 = vmatprep.subr.bf16.mxu0 0
        %767 = vmatpush1.bf16.xpose.msra.mxu0 0
        %768 = vmatprep.subr.bf16.mxu0 0
        %769 = vmatpush1.bf16.xpose.msra.mxu0 0
        %770 = vmatprep.subr.bf16.mxu0 0
        %771 = vmatpush1.bf16.xpose.msra.mxu0 0
        %772 = vmatprep.subr.bf16.mxu0 0
        %773 = vmatpush1.bf16.xpose.msra.mxu0 0
        %774 = vmatprep.subr.bf16.mxu0 0
        %775 = vmatpush1.bf16.xpose.msra.mxu0 0
        %776 = vmatprep.subr.bf16.mxu0 0
        %777 = vmatpush1.bf16.xpose.msra.mxu0 0
        %778 = vmatprep.subr.bf16.mxu0 0
        %779 = vmatpush1.bf16.xpose.msra.mxu0 0
        %780 = vmatprep.subr.bf16.mxu0 0
        %781 = vmatpush1.bf16.xpose.msra.mxu0 0
        %782 = vmatprep.subr.bf16.mxu0 0
        %783 = vmatpush1.bf16.xpose.msra.mxu0 0
        %784 = vmatprep.subr.bf16.mxu0 0
        %785 = vmatpush1.bf16.xpose.msra.mxu0 0
        %786 = vmatprep.subr.bf16.mxu0 0
        %787 = vmatpush1.bf16.xpose.msra.mxu0 0
        %788 = vmatprep.subr.bf16.mxu0 0
        %789 = vmatpush1.bf16.xpose.msra.mxu0 0
        %790 = vmatprep.subr.bf16.mxu0 0
        %791 = vmatpush1.bf16.xpose.msra.mxu0 0
        %792 = vmatprep.subr.bf16.mxu0 0
        %793 = vmatpush1.bf16.xpose.msra.mxu0 0
        %794 = vmatprep.mubr.bf16.mxu0 0
        %795 = vmatmul.mubr.bf16.gmra.mrb[0].mxu0 %v757
        %v796 = vpop.f32.mrb[0].mxu0
        %v797 = vadd.f32 0.0, %v796
        %v798 = vpop.f32.mrb[0].mxu0
        %v799 = vpop.f32.mrb[0].mxu0
        %v800 = vpop.f32.mrb[0].mxu0
        %801 = vdwg.mxu0
        %v802 = vsel %vm533, %v797, -inf
        %803 = vmax.xlane.f32.xlu0 %v802
        %v804 = vpop.xlane.xlu0 %803
        %v805 = vsub.f32 %v797, %v804
        %v806 = vmul.f32 %v805, 1.442695
        %v807 = vpow.pop %v806
        %v808 = vsel %vm533, %v807, 0.0
        %809 = vadd.xlane.f32.xlu0 %v808
        %v810 = vpop.xlane.xlu0 %809
        %v811 = vrcp.pop %v810
        %v812 = vmul.f32 %v807, %v811
        %v813 = vpack.c.bf16 %v812, %v812
        %814 = vrot.lane.b32.xlu0 %v532, 112
        %v815 = vpop.permute.xlu0 %814
        %v817 = vsel %vm533, %v813, 0
        %v820 = vsel %vm595, %v815, 0
        %822 = vmatprep.subr.bf16.mxu0 0
        %823 = vmatpush1.bf16.msra.mxu0 %v820
        %824 = vmatprep.subr.bf16.mxu0 0
        %825 = vmatpush1.bf16.msra.mxu0 0
        %826 = vmatprep.subr.bf16.mxu0 0
        %827 = vmatpush1.bf16.msra.mxu0 0
        %828 = vmatprep.subr.bf16.mxu0 0
        %829 = vmatpush1.bf16.msra.mxu0 0
        %830 = vmatprep.subr.bf16.mxu0 0
        %831 = vmatpush1.bf16.msra.mxu0 0
        %832 = vmatprep.subr.bf16.mxu0 0
        %833 = vmatpush1.bf16.msra.mxu0 0
        %834 = vmatprep.subr.bf16.mxu0 0
        %835 = vmatpush1.bf16.msra.mxu0 0
        %836 = vmatprep.subr.bf16.mxu0 0
        %837 = vmatpush1.bf16.msra.mxu0 0
        %838 = vmatprep.subr.bf16.mxu0 0
        %839 = vmatpush1.bf16.msra.mxu0 0
        %840 = vmatprep.subr.bf16.mxu0 0
        %841 = vmatpush1.bf16.msra.mxu0 0
        %842 = vmatprep.subr.bf16.mxu0 0
        %843 = vmatpush1.bf16.msra.mxu0 0
        %844 = vmatprep.subr.bf16.mxu0 0
        %845 = vmatpush1.bf16.msra.mxu0 0
        %846 = vmatprep.subr.bf16.mxu0 0
        %847 = vmatpush1.bf16.msra.mxu0 0
        %848 = vmatprep.subr.bf16.mxu0 0
        %849 = vmatpush1.bf16.msra.mxu0 0
        %850 = vmatprep.subr.bf16.mxu0 0
        %851 = vmatpush1.bf16.msra.mxu0 0
        %852 = vmatprep.subr.bf16.mxu0 0
        %853 = vmatpush1.bf16.msra.mxu0 0
        %854 = vmatprep.mubr.bf16.mxu0 0
        %855 = vmatmul.mubr.bf16.gmra.mrb[0].mxu0 %v817
        %v856 = vpop.f32.mrb[0].mxu0
        %v857 = vadd.f32 0.0, %v856
        %v858 = vpop.f32.mrb[0].mxu0
        %v859 = vpop.f32.mrb[0].mxu0
        %v860 = vpop.f32.mrb[0].mxu0
        %861 = vdwg.mxu0
        %862 = vrot.lane.b32.xlu0 %v530, 104
        %v863 = vpop.permute.xlu0 %862
        %864 = vrot.lane.b32.xlu0 %v531, 104
        %v865 = vpop.permute.xlu0 %864
        %v867 = vsel %vm533, %v863, 0
        %v870 = vsel %vm533, %v865, 0
        %872 = vmatprep.subr.bf16.mxu0 0
        %873 = vmatpush1.bf16.xpose.msra.mxu0 %v870
        %874 = vmatprep.subr.bf16.mxu0 0
        %875 = vmatpush1.bf16.xpose.msra.mxu0 0
        %876 = vmatprep.subr.bf16.mxu0 0
        %877 = vmatpush1.bf16.xpose.msra.mxu0 0
        %878 = vmatprep.subr.bf16.mxu0 0
        %879 = vmatpush1.bf16.xpose.msra.mxu0 0
        %880 = vmatprep.subr.bf16.mxu0 0
        %881 = vmatpush1.bf16.xpose.msra.mxu0 0
        %882 = vmatprep.subr.bf16.mxu0 0
        %883 = vmatpush1.bf16.xpose.msra.mxu0 0
        %884 = vmatprep.subr.bf16.mxu0 0
        %885 = vmatpush1.bf16.xpose.msra.mxu0 0
        %886 = vmatprep.subr.bf16.mxu0 0
        %887 = vmatpush1.bf16.xpose.msra.mxu0 0
        %888 = vmatprep.subr.bf16.mxu0 0
        %889 = vmatpush1.bf16.xpose.msra.mxu0 0
        %890 = vmatprep.subr.bf16.mxu0 0
        %891 = vmatpush1.bf16.xpose.msra.mxu0 0
        %892 = vmatprep.subr.bf16.mxu0 0
        %893 = vmatpush1.bf16.xpose.msra.mxu0 0
        %894 = vmatprep.subr.bf16.mxu0 0
        %895 = vmatpush1.bf16.xpose.msra.mxu0 0
        %896 = vmatprep.subr.bf16.mxu0 0
        %897 = vmatpush1.bf16.xpose.msra.mxu0 0
        %898 = vmatprep.subr.bf16.mxu0 0
        %899 = vmatpush1.bf16.xpose.msra.mxu0 0
        %900 = vmatprep.subr.bf16.mxu0 0
        %901 = vmatpush1.bf16.xpose.msra.mxu0 0
        %902 = vmatprep.subr.bf16.mxu0 0
        %903 = vmatpush1.bf16.xpose.msra.mxu0 0
        %904 = vmatprep.mubr.bf16.mxu0 0
        %905 = vmatmul.mubr.bf16.gmra.mrb[0].mxu0 %v867
        %v906 = vpop.f32.mrb[0].mxu0
        %v907 = vadd.f32 0.0, %v906
        %v908 = vpop.f32.mrb[0].mxu0
        %v909 = vpop.f32.mrb[0].mxu0
        %v910 = vpop.f32.mrb[0].mxu0
        %911 = vdwg.mxu0
        %v912 = vsel %vm533, %v907, -inf
        %913 = vmax.xlane.f32.xlu0 %v912
        %v914 = vpop.xlane.xlu0 %913
        %v915 = vsub.f32 %v907, %v914
        %v916 = vmul.f32 %v915, 1.442695
        %v917 = vpow.pop %v916
        %v918 = vsel %vm533, %v917, 0.0
        %919 = vadd.xlane.f32.xlu0 %v918
        %v920 = vpop.xlane.xlu0 %919
        %v921 = vrcp.pop %v920
        %v922 = vmul.f32 %v917, %v921
        %v923 = vpack.c.bf16 %v922, %v922
        %924 = vrot.lane.b32.xlu0 %v532, 104
        %v925 = vpop.permute.xlu0 %924
        %v927 = vsel %vm533, %v923, 0
        %v930 = vsel %vm595, %v925, 0
        %932 = vmatprep.subr.bf16.mxu0 0
        %933 = vmatpush1.bf16.msra.mxu0 %v930
        %934 = vmatprep.subr.bf16.mxu0 0
        %935 = vmatpush1.bf16.msra.mxu0 0
        %936 = vmatprep.subr.bf16.mxu0 0
        %937 = vmatpush1.bf16.msra.mxu0 0
        %938 = vmatprep.subr.bf16.mxu0 0
        %939 = vmatpush1.bf16.msra.mxu0 0
        %940 = vmatprep.subr.bf16.mxu0 0
        %941 = vmatpush1.bf16.msra.mxu0 0
        %942 = vmatprep.subr.bf16.mxu0 0
        %943 = vmatpush1.bf16.msra.mxu0 0
        %944 = vmatprep.subr.bf16.mxu0 0
        %945 = vmatpush1.bf16.msra.mxu0 0
        %946 = vmatprep.subr.bf16.mxu0 0
        %947 = vmatpush1.bf16.msra.mxu0 0
        %948 = vmatprep.subr.bf16.mxu0 0
        %949 = vmatpush1.bf16.msra.mxu0 0
        %950 = vmatprep.subr.bf16.mxu0 0
        %951 = vmatpush1.bf16.msra.mxu0 0
        %952 = vmatprep.subr.bf16.mxu0 0
        %953 = vmatpush1.bf16.msra.mxu0 0
        %954 = vmatprep.subr.bf16.mxu0 0
        %955 = vmatpush1.bf16.msra.mxu0 0
        %956 = vmatprep.subr.bf16.mxu0 0
        %957 = vmatpush1.bf16.msra.mxu0 0
        %958 = vmatprep.subr.bf16.mxu0 0
        %959 = vmatpush1.bf16.msra.mxu0 0
        %960 = vmatprep.subr.bf16.mxu0 0
        %961 = vmatpush1.bf16.msra.mxu0 0
        %962 = vmatprep.subr.bf16.mxu0 0
        %963 = vmatpush1.bf16.msra.mxu0 0
        %964 = vmatprep.mubr.bf16.mxu0 0
        %965 = vmatmul.mubr.bf16.gmra.mrb[0].mxu0 %v927
        %v966 = vpop.f32.mrb[0].mxu0
        %v967 = vadd.f32 0.0, %v966
        %v968 = vpop.f32.mrb[0].mxu0
        %v969 = vpop.f32.mrb[0].mxu0
        %v970 = vpop.f32.mrb[0].mxu0
        %971 = vdwg.mxu0
        %973 = vrot.lane.b32.xlu0 %v747, 8
        %v974 = vpop.permute.xlu0 %973
        %977 = vrot.lane.b32.xlu0 %v857, 16
        %v978 = vpop.permute.xlu0 %977
        %981 = vrot.lane.b32.xlu0 %v967, 24
        %v982 = vpop.permute.xlu0 %981
        %v984 = vsel %vm533, %v634, %v974
        %vm985 = vcmask 130048
        %v986 = vsel %vm985, %v984, %v978
        %vm987 = vcmask 195584
        %v988 = vsel %vm987, %v986, %v982
        %vm989 = vcmask 261120
        %v990 = vsel %vm989, %v988, 0.0
        %v991 = vpack.c.bf16 %v990, %v990
        %v992 = vld [vmem:[#allocation7] sm:$0xf]
        %v993 = vld [vmem:[#allocation7 + $0x4] sm:$0xf]
        %v994 = vld [vmem:[#allocation7 + $0x8] sm:$0xf]
        %v995 = vld [vmem:[#allocation7 + $0xc] sm:$0xf]
        %v996 = vld [vmem:[#allocation7 + $0x10] sm:$0xf]
        %v997 = vld [vmem:[#allocation7 + $0x14] sm:$0xf]
        %v998 = vld [vmem:[#allocation7 + $0x18] sm:$0xf]
        %v999 = vld [vmem:[#allocation7 + $0x1c] sm:$0xf]
        %v1000 = vld [vmem:[#allocation7 + $0x20] sm:$0xf]
        %v1001 = vld [vmem:[#allocation7 + $0x24] sm:$0xf]
        %v1002 = vld [vmem:[#allocation7 + $0x28] sm:$0xf]
        %v1003 = vld [vmem:[#allocation7 + $0x2c] sm:$0xf]
        %v1004 = vld [vmem:[#allocation7 + $0x30] sm:$0xf]
        %v1005 = vld [vmem:[#allocation7 + $0x34] sm:$0xf]
        %v1006 = vld [vmem:[#allocation7 + $0x38] sm:$0xf]
        %v1007 = vld [vmem:[#allocation7 + $0x3c] sm:$0xf]
        %v1008 = vld [vmem:[%s4] sm:$0x1]
        %v1010 = vlaneseq
        %v1011 = vshrl.u32 %v1010, 7
        %v1012 = vsub.s32 0, %v1011
        %v1013 = vrot.slane %v1008, %v1012
        %v1031 = vunpack.c.l.b16 %v992
        %v1032 = vunpack.c.l.b16 %v993
        %v1033 = vunpack.c.l.b16 %v994
        %v1034 = vunpack.c.l.b16 %v995
        %v1035 = vunpack.c.l.b16 %v996
        %v1036 = vunpack.c.l.b16 %v997
        %v1037 = vunpack.c.l.b16 %v998
        %v1038 = vunpack.c.l.b16 %v999
        %v1039 = vunpack.c.l.b16 %v1000
        %v1040 = vunpack.c.l.b16 %v1001
        %v1041 = vunpack.c.l.b16 %v1002
        %v1042 = vunpack.c.l.b16 %v1003
        %v1043 = vunpack.c.l.b16 %v1004
        %v1044 = vunpack.c.l.b16 %v1005
        %v1045 = vunpack.c.l.b16 %v1006
        %v1046 = vunpack.c.l.b16 %v1007
        %v1047 = vpack.c.b16 %v1032, %v1031
        %v1048 = vpack.c.b16 %v1034, %v1033
        %v1049 = vpack.c.b16 %v1036, %v1035
        %v1050 = vpack.c.b16 %v1038, %v1037
        %v1051 = vpack.c.b16 %v1040, %v1039
        %v1052 = vpack.c.b16 %v1042, %v1041
        %v1053 = vpack.c.b16 %v1044, %v1043
        %v1054 = vpack.c.b16 %v1046, %v1045
        %1063 = vmatprep.subr.bf16.mxu0 0
        %1064 = vmatpush1.bf16.msra.mxu0 %v1047
        %1065 = vmatprep.subr.bf16.mxu0 0
        %1066 = vmatpush1.bf16.msra.mxu0 %v1048
        %1067 = vmatprep.subr.bf16.mxu0 0
        %1068 = vmatpush1.bf16.msra.mxu0 %v1049
        %1069 = vmatprep.subr.bf16.mxu0 0
        %1070 = vmatpush1.bf16.msra.mxu0 %v1050
        %1071 = vmatprep.subr.bf16.mxu0 0
        %1072 = vmatpush1.bf16.msra.mxu0 %v1051
        %1073 = vmatprep.subr.bf16.mxu0 0
        %1074 = vmatpush1.bf16.msra.mxu0 %v1052
        %1075 = vmatprep.subr.bf16.mxu0 0
        %1076 = vmatpush1.bf16.msra.mxu0 %v1053
        %1077 = vmatprep.subr.bf16.mxu0 0
        %1078 = vmatpush1.bf16.msra.mxu0 %v1054
        %1079 = vmatprep.subr.bf16.mxu0 0
        %1080 = vmatpush1.bf16.msra.mxu0 0
        %1081 = vmatprep.subr.bf16.mxu0 0
        %1082 = vmatpush1.bf16.msra.mxu0 0
        %1083 = vmatprep.subr.bf16.mxu0 0
        %1084 = vmatpush1.bf16.msra.mxu0 0
        %1085 = vmatprep.subr.bf16.mxu0 0
        %1086 = vmatpush1.bf16.msra.mxu0 0
        %1087 = vmatprep.subr.bf16.mxu0 0
        %1088 = vmatpush1.bf16.msra.mxu0 0
        %1089 = vmatprep.subr.bf16.mxu0 0
        %1090 = vmatpush1.bf16.msra.mxu0 0
        %1091 = vmatprep.subr.bf16.mxu0 0
        %1092 = vmatpush1.bf16.msra.mxu0 0
        %1093 = vmatprep.subr.bf16.mxu0 0
        %1094 = vmatpush1.bf16.msra.mxu0 0
        %1095 = vmatprep.mubr.bf16.mxu0 0
        %1096 = vmatmul.mubr.bf16.gmra.mrb[0].mxu0 %v991
        %v1097 = vpop.f32.mrb[0].mxu0
        %v1098 = vadd.f32 %v1013, %v1097
        %v1099 = vpop.f32.mrb[0].mxu0
        %v1100 = vpop.f32.mrb[0].mxu0
        %v1101 = vpop.f32.mrb[0].mxu0
        %1102 = vdwg.mxu0
        %v1103 = vld [vmem:[%s234] sm:$0xff]
        %v1104 = vadd.f32 %v1098, %v1103
        %1105 = vst [vmem:[%s268] sm:$0xff] %v1104
        %s1106 = sand.u32 %s141, 1
        %s1107 = scalar_lea.sflag [#allocation4], %s1106
        %s1108 = sand.u32 %s141, 1
        %s1109 = smul.addr %s1108, 8
        %s1110 = scalar_lea.vmem [#allocation8], %s1109
        // Predicated region
        $region53: #{tpu_custom_call.1} parent=39 // pred_check
          %p1111 = pneg %p151
        $region54: #{tpu_custom_call.1} parent=39 // pred_check_branch
          %1113 = sbr.rel (%p1111) target = $region56
        $region55: #{tpu_custom_call.1} parent=39 // pred_region
          %s1115 = ssub.s32 128, 128
          %1116 = vsyncadd %s1107, %s1115
          %s1117 = smul.addr %s23, 128
          %s1118 = scalar_lea.hbm %s5, %s1117
          %s1120 = sshll.u32 %s1110, 4
          %s1121 = int_to_ptr.vmem [resolvable:$true] %s1120
          %1123 = dma.vmem_to_hbm [thread:$0]  %s1121, 128, %s1118, %s1107
        $region56: #{tpu_custom_call.1} parent=39 // pred_fallthru
          _
      $region40: #{tpu_custom_call.1} parent=5 // pred_fallthru
        _
      %p1124 = scmp.le.s32.totalorder 2, %s18
      // Predicated region
      $region57: #{tpu_custom_call.1} parent=5 // pred_check
        %p1125 = pneg %p1124
      $region58: #{tpu_custom_call.1} parent=5 // pred_check_branch
        %1127 = sbr.rel (%p1125) target = $region60
      $region59: #{tpu_custom_call.1} parent=5 // pred_region
        %s1128 = ssub.s32 %s18, 2
        // Predicated region
        $region61: #{tpu_custom_call.1} parent=59 // pred_check
          %p1129 = pneg %p157
        $region62: #{tpu_custom_call.1} parent=59 // pred_check_branch
          %1131 = sbr.rel (%p1129) target = $region64
        $region63: #{tpu_custom_call.1} parent=59 // pred_region
          %s1132 = sand.u32 %s142, 1
          %s1133 = scalar_lea.sflag [#allocation4], %s1132
          %s1134 = sand.u32 %s142, 1
          %s1135 = smul.addr %s1134, 8
          %s1136 = scalar_lea.vmem [#allocation8], %s1135
          %1137 = dma.done %s1133, 128
        $region64: #{tpu_custom_call.1} parent=59 // pred_fallthru
          _
      $region60: #{tpu_custom_call.1} parent=5 // pred_fallthru
        _
    $region6: #{tpu_custom_call.1} parent=1 // loop_footer
      %s22 = sadd.s32 1, %s18
    $region7: #{tpu_custom_call.1} parent=1 // loop_footer_branch
      %17 = sbr.rel target = $region3
    $region8: #{tpu_custom_call.1} parent=1 // loop_exit
      _
    %1138 = vsyncpa [#allocation3], 1
    %s1139 = scalar_lea.sflag [#allocation3], 1
    %1140 = vsyncpa %s1139, 1
    %1141 = vsyncpa [#allocation6], 1
    %1142 = vsyncpa [#allocation4], 1
    %s1143 = scalar_lea.sflag [#allocation4], 1
    %1144 = vsyncpa %s1143, 1

// kernel: tpu_custom_call.1
$region0: #{tpu_custom_call.1}
  #allocation0 [shape = 'u32[]', space=smem, size = 0x4, offset = 0x4, fixed_abs, tag = 'smem constant byte address 0x4 - core index']
  #allocation1 [shape = 'u32[144,128]{1,0:T(1,128)}', space=vmem, size = 0x12000, scoped, tag = 'internal scratch']
  %s0 = inlined_call_operand.hbm [shape: f32[2,8,128], index: 0, kind: input, shape index: {}]
  %s1 = inlined_call_operand.hbm [shape: bf16[128,384], index: 1, kind: input, shape index: {}]
  %s2 = inlined_call_operand.vmem [shape: f32[1,384], index: 2, kind: input, shape index: {}]
  %s3 = inlined_call_operand.hbm [shape: bf16[128,128], index: 3, kind: input, shape index: {}]
  %s4 = inlined_call_operand.vmem [shape: f32[1,128], index: 4, kind: input, shape index: {}]
  %s5 = inlined_call_operand.hbm [shape: f32[2,8,128], index: 5, kind: output, shape index: {}]
  %s6 = sld [smem:[#allocation0]]
  $region65: #{tpu_custom_call.1} parent=0
    _
  %s8 = ssub.s32 1, %s6
  %s9 = scalar_select 0, %s8, %s6
  $region1: #{tpu_custom_call.1} parent=0
    #allocation2 [shape = 'u8[8192]{0}', space=vmem, size = 0x2000, scoped, tag = 'input window, operand 0']
    #allocation3 [shape = 's32[2]{0}', space=sflag, size = 0x8, scoped, tag = 'scoped memory for tpu_custom_call.1']
    #allocation4 [shape = 's32[2]{0}', space=sflag, size = 0x8, scoped, tag = 'scoped memory for tpu_custom_call.1']
    #allocation5 [shape = 'u8[98304]{0}', space=vmem, size = 0x18000, scoped, tag = 'input window, operand 1, single buffered']
    #allocation6 [shape = 's32[1]{0}', space=sflag, size = 0x4, scoped, tag = 'scoped memory for tpu_custom_call.1']
    #allocation7 [shape = 'u8[32768]{0}', space=vmem, size = 0x8000, scoped, tag = 'input window, operand 3, single buffered']
    #allocation8 [shape = 'u8[8192]{0}', space=vmem, size = 0x2000, scoped, tag = 'output window, operand 0']
    %10 = vsyncpa [#allocation3], 0
    %s11 = scalar_lea.sflag [#allocation3], 1
    %12 = vsyncpa %s11, 0
    %13 = vsyncpa [#allocation6], 0
    %14 = vsyncpa [#allocation4], 0
    %s15 = scalar_lea.sflag [#allocation4], 1
    %16 = vsyncpa %s15, 0
    loop: start=0, step=1, limit=4
    $region2: #{tpu_custom_call.1} parent=1 // loop_pre_header
      _
    $region3: #{tpu_custom_call.1} parent=1 // loop_header
      %s18 = sphi 0, %s22
      %p19 = scmp.ge.s32.totalorder %s18, 4
      %s28 = sphi 0, %s30
      %s31 = sphi 0, %s28
      %s32 = sphi 0, %s31
      %s48 = sphi 0, %s32
      %s52 = sphi 0, %s52
      %s54 = sphi 0, %s52
      %s55 = sphi 0, %s54
      %s69 = sphi 0, %s55
      %s73 = sphi 0, %s73
      %s75 = sphi 0, %s73
      %s76 = sphi 0, %s75
      %s90 = sphi 0, %s76
      %s94 = sphi 0, %s94
      %s96 = sphi 0, %s94
      %s97 = sphi 0, %s96
      %s111 = sphi 0, %s97
      %s115 = sphi 0, %s115
      %s117 = sphi 0, %s115
      %s118 = sphi 0, %s117
      %s132 = sphi 0, %s118
      %s138 = sphi 0, %s140
      %s141 = sphi 0, %s138
      %s142 = sphi 0, %s141
      %s158 = sphi 0, %s142
    $region4: #{tpu_custom_call.1} parent=1 // loop_header_branch
      %21 = sbr.rel (%p19) target = $region8
    $region5: #{tpu_custom_call.1} parent=1 // loop_body
      %s23 = ssub.s32 %s18, 1
      %s24 = ssub.s32 %s18, 2
      %s25 = sadd.s32 %s18, 1
      %s26 = ssub.s32 %s18, %s25
      %p27 = scmp.eq.s32.totalorder %s26, 0
      %s29 = sadd.s32 %s28, 1
      %s30 = scalar_select %p27, %s28, %s29
      %p33 = pneg %p27
      %p34 = scmp.eq.s32.totalorder %s18, 1
      %p35 = por %p33, %p34
      %p36 = scmp.ne.s32.totalorder %s28, %s31
      %p37 = scmp.eq.s32.totalorder %s18, 0
      %p38 = por %p36, %p37
      %p39 = scmp.ne.s32.totalorder %s28, %s31
      %p40 = scmp.eq.s32.totalorder %s23, 1
      %p41 = por %p39, %p40
      %p42 = scmp.ne.s32.totalorder %s31, %s32
      %p43 = scmp.eq.s32.totalorder %s23, 0
      %p44 = por %p42, %p43
      %p45 = scmp.ne.s32.totalorder %s31, %s32
      %p46 = scmp.eq.s32.totalorder %s24, 1
      %p47 = por %p45, %p46
      %p49 = scmp.ne.s32.totalorder %s32, %s48
      %p50 = scmp.eq.s32.totalorder %s24, 0
      %p51 = por %p49, %p50
      %s53 = sadd.s32 %s52, 1
      %p56 = scmp.eq.s32.totalorder %s18, 1
      %p57 = scmp.ne.s32.totalorder %s52, %s54
      %p58 = scmp.eq.s32.totalorder %s18, 0
      %p59 = por %p57, %p58
      %p60 = scmp.ne.s32.totalorder %s52, %s54
      %p61 = scmp.eq.s32.totalorder %s23, 1
      %p62 = por %p60, %p61
      %p63 = scmp.ne.s32.totalorder %s54, %s55
      %p64 = scmp.eq.s32.totalorder %s23, 0
      %p65 = por %p63, %p64
      %p66 = scmp.ne.s32.totalorder %s54, %s55
      %p67 = scmp.eq.s32.totalorder %s24, 1
      %p68 = por %p66, %p67
      %p70 = scmp.ne.s32.totalorder %s55, %s69
      %p71 = scmp.eq.s32.totalorder %s24, 0
      %p72 = por %p70, %p71
      %s74 = sadd.s32 %s73, 1
      %p77 = scmp.eq.s32.totalorder %s18, 1
      %p78 = scmp.ne.s32.totalorder %s73, %s75
      %p79 = scmp.eq.s32.totalorder %s18, 0
      %p80 = por %p78, %p79
      %p81 = scmp.ne.s32.totalorder %s73, %s75
      %p82 = scmp.eq.s32.totalorder %s23, 1
      %p83 = por %p81, %p82
      %p84 = scmp.ne.s32.totalorder %s75, %s76
      %p85 = scmp.eq.s32.totalorder %s23, 0
      %p86 = por %p84, %p85
      %p87 = scmp.ne.s32.totalorder %s75, %s76
      %p88 = scmp.eq.s32.totalorder %s24, 1
      %p89 = por %p87, %p88
      %p91 = scmp.ne.s32.totalorder %s76, %s90
      %p92 = scmp.eq.s32.totalorder %s24, 0
      %p93 = por %p91, %p92
      %s95 = sadd.s32 %s94, 1
      %p98 = scmp.eq.s32.totalorder %s18, 1
      %p99 = scmp.ne.s32.totalorder %s94, %s96
      %p100 = scmp.eq.s32.totalorder %s18, 0
      %p101 = por %p99, %p100
      %p102 = scmp.ne.s32.totalorder %s94, %s96
      %p103 = scmp.eq.s32.totalorder %s23, 1
      %p104 = por %p102, %p103
      %p105 = scmp.ne.s32.totalorder %s96, %s97
      %p106 = scmp.eq.s32.totalorder %s23, 0
      %p107 = por %p105, %p106
      %p108 = scmp.ne.s32.totalorder %s96, %s97
      %p109 = scmp.eq.s32.totalorder %s24, 1
      %p110 = por %p108, %p109
      %p112 = scmp.ne.s32.totalorder %s97, %s111
      %p113 = scmp.eq.s32.totalorder %s24, 0
      %p114 = por %p112, %p113
      %s116 = sadd.s32 %s115, 1
      %p119 = scmp.eq.s32.totalorder %s18, 1
      %p120 = scmp.ne.s32.totalorder %s115, %s117
      %p121 = scmp.eq.s32.totalorder %s18, 0
      %p122 = por %p120, %p121
      %p123 = scmp.ne.s32.totalorder %s115, %s117
      %p124 = scmp.eq.s32.totalorder %s23, 1
      %p125 = por %p123, %p124
      %p126 = scmp.ne.s32.totalorder %s117, %s118
      %p127 = scmp.eq.s32.totalorder %s23, 0
      %p128 = por %p126, %p127
      %p129 = scmp.ne.s32.totalorder %s117, %s118
      %p130 = scmp.eq.s32.totalorder %s24, 1
      %p131 = por %p129, %p130
      %p133 = scmp.ne.s32.totalorder %s118, %s132
      %p134 = scmp.eq.s32.totalorder %s24, 0
      %p135 = por %p133, %p134
      %s136 = ssub.s32 %s18, %s25
      %p137 = scmp.eq.s32.totalorder %s136, 0
      %s139 = sadd.s32 %s138, 1
      %s140 = scalar_select %p137, %s138, %s139
      %p143 = pneg %p137
      %p144 = scmp.eq.s32.totalorder %s18, 1
      %p145 = por %p143, %p144
      %p146 = scmp.ne.s32.totalorder %s138, %s141
      %p147 = scmp.eq.s32.totalorder %s18, 0
      %p148 = por %p146, %p147
      %p149 = scmp.ne.s32.totalorder %s138, %s141
      %p150 = scmp.eq.s32.totalorder %s23, 1
      %p151 = por %p149, %p150
      %p152 = scmp.ne.s32.totalorder %s141, %s142
      %p153 = scmp.eq.s32.totalorder %s23, 0
      %p154 = por %p152, %p153
      %p155 = scmp.ne.s32.totalorder %s141, %s142
      %p156 = scmp.eq.s32.totalorder %s24, 1
      %p157 = por %p155, %p156
      %p159 = scmp.ne.s32.totalorder %s142, %s158
      %p160 = scmp.eq.s32.totalorder %s24, 0
      %p161 = por %p159, %p160
      %p162 = scmp.le.s32.totalorder 1, %s18
      %p163 = scmp.lt.s32.totalorder %s18, 3
      %p164 = pnand %p162, %p163
      %p165 = pneg %p164
      // Predicated region
      $region9: #{tpu_custom_call.1} parent=5 // pred_check
        _
      $region10: #{tpu_custom_call.1} parent=5 // pred_check_branch
        %167 = sbr.rel (%p164) target = $region12
      $region11: #{tpu_custom_call.1} parent=5 // pred_region
        %s168 = ssub.s32 %s18, 1
        // Predicated region
        $region13: #{tpu_custom_call.1} parent=11 // pred_check
          %p169 = pneg %p65
        $region14: #{tpu_custom_call.1} parent=11 // pred_check_branch
          %171 = sbr.rel (%p169) target = $region16
        $region15: #{tpu_custom_call.1} parent=11 // pred_region
          %s173 = ssub.s32 3072, 3072
          %174 = vsyncadd [#allocation6], %s173
          %s175 = sshll.u32 [#allocation5], 4
          %s176 = int_to_ptr.vmem [resolvable:$true] %s175
          %181 = dma.hbm_to_vmem [thread:$0]  %s1, 3072, %s176, [#allocation6], 192, 192, 12
        $region16: #{tpu_custom_call.1} parent=11 // pred_fallthru
          _
        // Predicated region
        $region17: #{tpu_custom_call.1} parent=11 // pred_check
          %p182 = pneg %p86
        $region18: #{tpu_custom_call.1} parent=11 // pred_check_branch
          %184 = sbr.rel (%p182) target = $region20
        $region19: #{tpu_custom_call.1} parent=11 // pred_region
          _
        $region20: #{tpu_custom_call.1} parent=11 // pred_fallthru
          _
        // Predicated region
        $region21: #{tpu_custom_call.1} parent=11 // pred_check
          %p185 = pneg %p107
        $region22: #{tpu_custom_call.1} parent=11 // pred_check_branch
          %187 = sbr.rel (%p185) target = $region24
        $region23: #{tpu_custom_call.1} parent=11 // pred_region
          %s189 = ssub.s32 1024, 1024
          %190 = vsyncadd [#allocation6], %s189
          %s191 = sshll.u32 [#allocation7], 4
          %s192 = int_to_ptr.vmem [resolvable:$true] %s191
          %197 = dma.hbm_to_vmem [thread:$0]  %s3, 1024, %s192, [#allocation6], 64, 64, 4
        $region24: #{tpu_custom_call.1} parent=11 // pred_fallthru
          _
        // Predicated region
        $region25: #{tpu_custom_call.1} parent=11 // pred_check
          %p198 = pneg %p128
        $region26: #{tpu_custom_call.1} parent=11 // pred_check_branch
          %200 = sbr.rel (%p198) target = $region28
        $region27: #{tpu_custom_call.1} parent=11 // pred_region
          _
        $region28: #{tpu_custom_call.1} parent=11 // pred_fallthru
          _
      $region12: #{tpu_custom_call.1} parent=5 // pred_fallthru
        _
      %p201 = scmp.lt.s32.totalorder %s18, 2
      // Predicated region
      $region29: #{tpu_custom_call.1} parent=5 // pred_check
        %p202 = pneg %p201
      $region30: #{tpu_custom_call.1} parent=5 // pred_check_branch
        %204 = sbr.rel (%p202) target = $region32
      $region31: #{tpu_custom_call.1} parent=5 // pred_region
        // Predicated region
        $region33: #{tpu_custom_call.1} parent=31 // pred_check
          %p205 = pneg %p38
        $region34: #{tpu_custom_call.1} parent=31 // pred_check_branch
          %207 = sbr.rel (%p205) target = $region36
        $region35: #{tpu_custom_call.1} parent=31 // pred_region
          %s208 = sand.u32 %s28, 1
          %s209 = scalar_lea.sflag [#allocation3], %s208
          %s210 = sand.u32 %s28, 1
          %s211 = smul.addr %s210, 8
          %s212 = scalar_lea.vmem [#allocation2], %s211
          %s214 = ssub.s32 128, 128
          %215 = vsyncadd %s209, %s214
          %s216 = smul.addr %s18, 128
          %s217 = scalar_lea.hbm %s0, %s216
          %s219 = sshll.u32 %s212, 4
          %s220 = int_to_ptr.vmem [resolvable:$true] %s219
          %222 = dma.hbm_to_vmem [thread:$0]  %s217, 128, %s220, %s209
        $region36: #{tpu_custom_call.1} parent=31 // pred_fallthru
          _
      $region32: #{tpu_custom_call.1} parent=5 // pred_fallthru
        _
      %p223 = scmp.le.s32.totalorder 1, %s18
      %p224 = scmp.lt.s32.totalorder %s18, 3
      %p225 = pnand %p223, %p224
      %p226 = pneg %p225
      // Predicated region
      $region37: #{tpu_custom_call.1} parent=5 // pred_check
        _
      $region38: #{tpu_custom_call.1} parent=5 // pred_check_branch
        %228 = sbr.rel (%p225) target = $region40
      $region39: #{tpu_custom_call.1} parent=5 // pred_region
        %s229 = ssub.s32 %s18, 1
        %s230 = sand.u32 %s31, 1
        %s231 = scalar_lea.sflag [#allocation3], %s230
        %s232 = sand.u32 %s31, 1
        %s233 = smul.addr %s232, 8
        %s234 = scalar_lea.vmem [#allocation2], %s233
        // Predicated region
        $region41: #{tpu_custom_call.1} parent=39 // pred_check
          %p235 = pneg %p44
        $region42: #{tpu_custom_call.1} parent=39 // pred_check_branch
          %237 = sbr.rel (%p235) target = $region44
        $region43: #{tpu_custom_call.1} parent=39 // pred_region
          %238 = dma.done %s231, 128
        $region44: #{tpu_custom_call.1} parent=39 // pred_fallthru
          _
        // Predicated region
        $region45: #{tpu_custom_call.1} parent=39 // pred_check
          %p239 = pneg %p65
        $region46: #{tpu_custom_call.1} parent=39 // pred_check_branch
          %241 = sbr.rel (%p239) target = $region48
        $region47: #{tpu_custom_call.1} parent=39 // pred_region
          %242 = dma.done [#allocation6], 3072
        $region48: #{tpu_custom_call.1} parent=39 // pred_fallthru
          _
        // Predicated region
        $region49: #{tpu_custom_call.1} parent=39 // pred_check
          %p243 = pneg %p107
        $region50: #{tpu_custom_call.1} parent=39 // pred_check_branch
          %245 = sbr.rel (%p243) target = $region52
        $region51: #{tpu_custom_call.1} parent=39 // pred_region
          %246 = dma.done [#allocation6], 1024
        $region52: #{tpu_custom_call.1} parent=39 // pred_fallthru
          _
        %s247 = sand.u32 %s31, 1
        %s248 = scalar_lea.sflag [#allocation3], %s247
        %s249 = sand.u32 %s31, 1
        %s250 = smul.addr %s249, 8
        %s251 = scalar_lea.vmem [#allocation2], %s250
        %p252 = pneg %p44
        %p253 = pneg %p41
        %p254 = pneg %p65
        %p255 = pneg %p62
        %p256 = pneg %p86
        %p257 = pneg %p83
        %p258 = pneg %p107
        %p259 = pneg %p104
        %p260 = pneg %p128
        %p261 = pneg %p125
        %p262 = pneg %p154
        %p263 = pneg %p151
        %s264 = sand.u32 %s141, 1
        %s265 = scalar_lea.sflag [#allocation4], %s264
        %s266 = sand.u32 %s141, 1
        %s267 = smul.addr %s266, 8
        %s268 = scalar_lea.vmem [#allocation8], %s267
        %v270 = vld [vmem:[%s234] sm:$0xff]
        %v271 = vpack.c.bf16 %v270, %v270
        %v272 = vld [vmem:[#allocation5] sm:$0xff]
        %v273 = vld [vmem:[#allocation5 + $0x8] sm:$0xf]
        %v274 = vld [vmem:[#allocation5 + $0xc] sm:$0xff]
        %v275 = vld [vmem:[#allocation5 + $0x14] sm:$0xf]
        %v276 = vld [vmem:[#allocation5 + $0x18] sm:$0xff]
        %v277 = vld [vmem:[#allocation5 + $0x20] sm:$0xf]
        %v278 = vld [vmem:[#allocation5 + $0x24] sm:$0xff]
        %v279 = vld [vmem:[#allocation5 + $0x2c] sm:$0xf]
        %v280 = vld [vmem:[#allocation5 + $0x30] sm:$0xff]
        %v281 = vld [vmem:[#allocation5 + $0x38] sm:$0xf]
        %v282 = vld [vmem:[#allocation5 + $0x3c] sm:$0xff]
        %v283 = vld [vmem:[#allocation5 + $0x44] sm:$0xf]
        %v284 = vld [vmem:[#allocation5 + $0x48] sm:$0xff]
        %v285 = vld [vmem:[#allocation5 + $0x50] sm:$0xf]
        %v286 = vld [vmem:[#allocation5 + $0x54] sm:$0xff]
        %v287 = vld [vmem:[#allocation5 + $0x5c] sm:$0xf]
        %v288 = vld [vmem:[#allocation5 + $0x60] sm:$0xff]
        %v289 = vld [vmem:[#allocation5 + $0x68] sm:$0xf]
        %v290 = vld [vmem:[#allocation5 + $0x6c] sm:$0xff]
        %v291 = vld [vmem:[#allocation5 + $0x74] sm:$0xf]
        %v292 = vld [vmem:[#allocation5 + $0x78] sm:$0xff]
        %v293 = vld [vmem:[#allocation5 + $0x80] sm:$0xf]
        %v294 = vld [vmem:[#allocation5 + $0x84] sm:$0xff]
        %v295 = vld [vmem:[#allocation5 + $0x8c] sm:$0xf]
        %v296 = vld [vmem:[#allocation5 + $0x90] sm:$0xff]
        %v297 = vld [vmem:[#allocation5 + $0x98] sm:$0xf]
        %v298 = vld [vmem:[#allocation5 + $0x9c] sm:$0xff]
        %v299 = vld [vmem:[#allocation5 + $0xa4] sm:$0xf]
        %v300 = vld [vmem:[#allocation5 + $0xa8] sm:$0xff]
        %v301 = vld [vmem:[#allocation5 + $0xb0] sm:$0xf]
        %v302 = vld [vmem:[#allocation5 + $0xb4] sm:$0xff]
        %v303 = vld [vmem:[#allocation5 + $0xbc] sm:$0xf]
        %v304 = vld [vmem:[%s2] sm:$0x7]
        %v306 = vlaneseq
        %v307 = vshrl.u32 %v306, 7
        %v308 = vsub.s32 0, %v307
        %v309 = vrot.slane %v304, %v308
        %v310 = vlaneseq
        %v311 = vshrl.u32 %v310, 7
        %v312 = vsub.s32 1, %v311
        %v313 = vrot.slane %v304, %v312
        %v314 = vlaneseq
        %v315 = vshrl.u32 %v314, 7
        %v316 = vsub.s32 2, %v315
        %v317 = vrot.slane %v304, %v316
        %v353 = vunpack.c.l.b16 %v272
        %v354 = vunpack.c.h.b16 %v272
        %v355 = vunpack.c.l.b16 %v273
        %v356 = vunpack.c.l.b16 %v274
        %v357 = vunpack.c.h.b16 %v274
        %v358 = vunpack.c.l.b16 %v275
        %v359 = vunpack.c.l.b16 %v276
        %v360 = vunpack.c.h.b16 %v276
        %v361 = vunpack.c.l.b16 %v277
        %v362 = vunpack.c.l.b16 %v278
        %v363 = vunpack.c.h.b16 %v278
        %v364 = vunpack.c.l.b16 %v279
        %v365 = vunpack.c.l.b16 %v280
        %v366 = vunpack.c.h.b16 %v280
        %v367 = vunpack.c.l.b16 %v281
        %v368 = vunpack.c.l.b16 %v282
        %v369 = vunpack.c.h.b16 %v282
        %v370 = vunpack.c.l.b16 %v283
        %v371 = vunpack.c.l.b16 %v284
        %v372 = vunpack.c.h.b16 %v284
        %v373 = vunpack.c.l.b16 %v285
        %v374 = vunpack.c.l.b16 %v286
        %v375 = vunpack.c.h.b16 %v286
        %v376 = vunpack.c.l.b16 %v287
        %v377 = vunpack.c.l.b16 %v288
        %v378 = vunpack.c.h.b16 %v288
        %v379 = vunpack.c.l.b16 %v289
        %v380 = vunpack.c.l.b16 %v290
        %v381 = vunpack.c.h.b16 %v290
        %v382 = vunpack.c.l.b16 %v291
        %v383 = vunpack.c.l.b16 %v292
        %v384 = vunpack.c.h.b16 %v292
        %v385 = vunpack.c.l.b16 %v293
        %v386 = vunpack.c.l.b16 %v294
        %v387 = vunpack.c.h.b16 %v294
        %v388 = vunpack.c.l.b16 %v295
        %v389 = vunpack.c.l.b16 %v296
        %v390 = vunpack.c.h.b16 %v296
        %v391 = vunpack.c.l.b16 %v297
        %v392 = vunpack.c.l.b16 %v298
        %v393 = vunpack.c.h.b16 %v298
        %v394 = vunpack.c.l.b16 %v299
        %v395 = vunpack.c.l.b16 %v300
        %v396 = vunpack.c.h.b16 %v300
        %v397 = vunpack.c.l.b16 %v301
        %v398 = vunpack.c.l.b16 %v302
        %v399 = vunpack.c.h.b16 %v302
        %v400 = vunpack.c.l.b16 %v303
        %v401 = vpack.c.b16 %v356, %v353
        %v402 = vpack.c.b16 %v357, %v354
        %v403 = vpack.c.b16 %v358, %v355
        %v404 = vpack.c.b16 %v362, %v359
        %v405 = vpack.c.b16 %v363, %v360
        %v406 = vpack.c.b16 %v364, %v361
        %v407 = vpack.c.b16 %v368, %v365
        %v408 = vpack.c.b16 %v369, %v366
        %v409 = vpack.c.b16 %v370, %v367
        %v410 = vpack.c.b16 %v374, %v371
        %v411 = vpack.c.b16 %v375, %v372
        %v412 = vpack.c.b16 %v376, %v373
        %v413 = vpack.c.b16 %v380, %v377
        %v414 = vpack.c.b16 %v381, %v378
        %v415 = vpack.c.b16 %v382, %v379
        %v416 = vpack.c.b16 %v386, %v383
        %v417 = vpack.c.b16 %v387, %v384
        %v418 = vpack.c.b16 %v388, %v385
        %v419 = vpack.c.b16 %v392, %v389
        %v420 = vpack.c.b16 %v393, %v390
        %v421 = vpack.c.b16 %v394, %v391
        %v422 = vpack.c.b16 %v398, %v395
        %v423 = vpack.c.b16 %v399, %v396
        %v424 = vpack.c.b16 %v400, %v397
        %449 = vmatprep.subr.bf16.mxu0 %v402
        %450 = vmatpush1.bf16.msra.mxu0 %v401
        %451 = vmatprep.subr.bf16.mxu0 %v405
        %452 = vmatpush1.bf16.msra.mxu0 %v404
        %453 = vmatprep.subr.bf16.mxu0 %v408
        %454 = vmatpush1.bf16.msra.mxu0 %v407
        %455 = vmatprep.subr.bf16.mxu0 %v411
        %456 = vmatpush1.bf16.msra.mxu0 %v410
        %457 = vmatprep.subr.bf16.mxu0 %v414
        %458 = vmatpush1.bf16.msra.mxu0 %v413
        %459 = vmatprep.subr.bf16.mxu0 %v417
        %460 = vmatpush1.bf16.msra.mxu0 %v416
        %461 = vmatprep.subr.bf16.mxu0 %v420
        %462 = vmatpush1.bf16.msra.mxu0 %v419
        %463 = vmatprep.subr.bf16.mxu0 %v423
        %464 = vmatpush1.bf16.msra.mxu0 %v422
        %465 = vmatprep.subr.bf16.mxu0 0
        %466 = vmatpush1.bf16.msra.mxu0 0
        %467 = vmatprep.subr.bf16.mxu0 0
        %468 = vmatpush1.bf16.msra.mxu0 0
        %469 = vmatprep.subr.bf16.mxu0 0
        %470 = vmatpush1.bf16.msra.mxu0 0
        %471 = vmatprep.subr.bf16.mxu0 0
        %472 = vmatpush1.bf16.msra.mxu0 0
        %473 = vmatprep.subr.bf16.mxu0 0
        %474 = vmatpush1.bf16.msra.mxu0 0
        %475 = vmatprep.subr.bf16.mxu0 0
        %476 = vmatpush1.bf16.msra.mxu0 0
        %477 = vmatprep.subr.bf16.mxu0 0
        %478 = vmatpush1.bf16.msra.mxu0 0
        %479 = vmatprep.subr.bf16.mxu0 0
        %480 = vmatpush1.bf16.msra.mxu0 0
        %481 = vmatprep.mubr.bf16.mxu0 0
        %482 = vmatmul.mubr.bf16.gmra.mrb[0].mxu0 %v271
        %v483 = vpop.f32.mrb[0].mxu0
        %v484 = vadd.f32 %v309, %v483
        %v485 = vpop.f32.mrb[0].mxu0
        %v486 = vadd.f32 %v313, %v485
        %v487 = vpop.f32.mrb[0].mxu0
        %v488 = vpop.f32.mrb[0].mxu0
        %489 = vdwg.mxu0
        %490 = vmatprep.subr.bf16.mxu0 0
        %491 = vmatpush1.bf16.msra.mxu0 %v403
        %492 = vmatprep.subr.bf16.mxu0 0
        %493 = vmatpush1.bf16.msra.mxu0 %v406
        %494 = vmatprep.subr.bf16.mxu0 0
        %495 = vmatpush1.bf16.msra.mxu0 %v409
        %496 = vmatprep.subr.bf16.mxu0 0
        %497 = vmatpush1.bf16.msra.mxu0 %v412
        %498 = vmatprep.subr.bf16.mxu0 0
        %499 = vmatpush1.bf16.msra.mxu0 %v415
        %500 = vmatprep.subr.bf16.mxu0 0
        %501 = vmatpush1.bf16.msra.mxu0 %v418
        %502 = vmatprep.subr.bf16.mxu0 0
        %503 = vmatpush1.bf16.msra.mxu0 %v421
        %504 = vmatprep.subr.bf16.mxu0 0
        %505 = vmatpush1.bf16.msra.mxu0 %v424
        %506 = vmatprep.subr.bf16.mxu0 0
        %507 = vmatpush1.bf16.msra.mxu0 0
        %508 = vmatprep.subr.bf16.mxu0 0
        %509 = vmatpush1.bf16.msra.mxu0 0
        %510 = vmatprep.subr.bf16.mxu0 0
        %511 = vmatpush1.bf16.msra.mxu0 0
        %512 = vmatprep.subr.bf16.mxu0 0
        %513 = vmatpush1.bf16.msra.mxu0 0
        %514 = vmatprep.subr.bf16.mxu0 0
        %515 = vmatpush1.bf16.msra.mxu0 0
        %516 = vmatprep.subr.bf16.mxu0 0
        %517 = vmatpush1.bf16.msra.mxu0 0
        %518 = vmatprep.subr.bf16.mxu0 0
        %519 = vmatpush1.bf16.msra.mxu0 0
        %520 = vmatprep.subr.bf16.mxu0 0
        %521 = vmatpush1.bf16.msra.mxu0 0
        %522 = vmatprep.mubr.bf16.mxu0 0
        %523 = vmatmul.mubr.bf16.gmra.mrb[0].mxu0 %v271
        %v524 = vpop.f32.mrb[0].mxu0
        %v525 = vadd.f32 %v317, %v524
        %v526 = vpop.f32.mrb[0].mxu0
        %v527 = vpop.f32.mrb[0].mxu0
        %v528 = vpop.f32.mrb[0].mxu0
        %529 = vdwg.mxu0
        %v530 = vpack.c.bf16 %v484, %v484
        %v531 = vpack.c.bf16 %v486, %v486
        %v532 = vpack.c.bf16 %v525, %v525
        %vm533 = vcmask 64512
        %v535 = vsel %vm533, %v530, 0
        %v538 = vsel %vm533, %v531, 0
        %540 = vmatprep.subr.bf16.mxu0 0
        %541 = vmatpush1.bf16.xpose.msra.mxu0 %v538
        %542 = vmatprep.subr.bf16.mxu0 0
        %543 = vmatpush1.bf16.xpose.msra.mxu0 0
        %544 = vmatprep.subr.bf16.mxu0 0
        %545 = vmatpush1.bf16.xpose.msra.mxu0 0
        %546 = vmatprep.subr.bf16.mxu0 0
        %547 = vmatpush1.bf16.xpose.msra.mxu0 0
        %548 = vmatprep.subr.bf16.mxu0 0
        %549 = vmatpush1.bf16.xpose.msra.mxu0 0
        %550 = vmatprep.subr.bf16.mxu0 0
        %551 = vmatpush1.bf16.xpose.msra.mxu0 0
        %552 = vmatprep.subr.bf16.mxu0 0
        %553 = vmatpush1.bf16.xpose.msra.mxu0 0
        %554 = vmatprep.subr.bf16.mxu0 0
        %555 = vmatpush1.bf16.xpose.msra.mxu0 0
        %556 = vmatprep.subr.bf16.mxu0 0
        %557 = vmatpush1.bf16.xpose.msra.mxu0 0
        %558 = vmatprep.subr.bf16.mxu0 0
        %559 = vmatpush1.bf16.xpose.msra.mxu0 0
        %560 = vmatprep.subr.bf16.mxu0 0
        %561 = vmatpush1.bf16.xpose.msra.mxu0 0
        %562 = vmatprep.subr.bf16.mxu0 0
        %563 = vmatpush1.bf16.xpose.msra.mxu0 0
        %564 = vmatprep.subr.bf16.mxu0 0
        %565 = vmatpush1.bf16.xpose.msra.mxu0 0
        %566 = vmatprep.subr.bf16.mxu0 0
        %567 = vmatpush1.bf16.xpose.msra.mxu0 0
        %568 = vmatprep.subr.bf16.mxu0 0
        %569 = vmatpush1.bf16.xpose.msra.mxu0 0
        %570 = vmatprep.subr.bf16.mxu0 0
        %571 = vmatpush1.bf16.xpose.msra.mxu0 0
        %572 = vmatprep.mubr.bf16.mxu0 0
        %573 = vmatmul.mubr.bf16.gmra.mrb[0].mxu0 %v535
        %v574 = vpop.f32.mrb[0].mxu0
        %v575 = vadd.f32 0.0, %v574
        %v576 = vpop.f32.mrb[0].mxu0
        %v577 = vpop.f32.mrb[0].mxu0
        %v578 = vpop.f32.mrb[0].mxu0
        %579 = vdwg.mxu0
        %v580 = vsel %vm533, %v575, -inf
        %581 = vmax.xlane.f32.xlu0 %v580
        %v582 = vpop.xlane.xlu0 %581
        %v583 = vsub.f32 %v575, %v582
        %v584 = vmul.f32 %v583, 1.442695
        %v585 = vpow.pop %v584
        %v586 = vsel %vm533, %v585, 0.0
        %587 = vadd.xlane.f32.xlu0 %v586
        %v588 = vpop.xlane.xlu0 %587
        %v589 = vrcp.pop %v588
        %v590 = vmul.f32 %v585, %v589
        %v591 = vpack.c.bf16 %v590, %v590
        %v593 = vsel %vm533, %v591, 0
        %vm595 = vcmask 1043456
        %v597 = vsel %vm595, %v532, 0
        %599 = vmatprep.subr.bf16.mxu0 0
        %600 = vmatpush1.bf16.msra.mxu0 %v597
        %601 = vmatprep.subr.bf16.mxu0 0
        %602 = vmatpush1.bf16.msra.mxu0 0
        %603 = vmatprep.subr.bf16.mxu0 0
        %604 = vmatpush1.bf16.msra.mxu0 0
        %605 = vmatprep.subr.bf16.mxu0 0
        %606 = vmatpush1.bf16.msra.mxu0 0
        %607 = vmatprep.subr.bf16.mxu0 0
        %608 = vmatpush1.bf16.msra.mxu0 0
        %609 = vmatprep.subr.bf16.mxu0 0
        %610 = vmatpush1.bf16.msra.mxu0 0
        %611 = vmatprep.subr.bf16.mxu0 0
        %612 = vmatpush1.bf16.msra.mxu0 0
        %613 = vmatprep.subr.bf16.mxu0 0
        %614 = vmatpush1.bf16.msra.mxu0 0
        %615 = vmatprep.subr.bf16.mxu0 0
        %616 = vmatpush1.bf16.msra.mxu0 0
        %617 = vmatprep.subr.bf16.mxu0 0
        %618 = vmatpush1.bf16.msra.mxu0 0
        %619 = vmatprep.subr.bf16.mxu0 0
        %620 = vmatpush1.bf16.msra.mxu0 0
        %621 = vmatprep.subr.bf16.mxu0 0
        %622 = vmatpush1.bf16.msra.mxu0 0
        %623 = vmatprep.subr.bf16.mxu0 0
        %624 = vmatpush1.bf16.msra.mxu0 0
        %625 = vmatprep.subr.bf16.mxu0 0
        %626 = vmatpush1.bf16.msra.mxu0 0
        %627 = vmatprep.subr.bf16.mxu0 0
        %628 = vmatpush1.bf16.msra.mxu0 0
        %629 = vmatprep.subr.bf16.mxu0 0
        %630 = vmatpush1.bf16.msra.mxu0 0
        %631 = vmatprep.mubr.bf16.mxu0 0
        %632 = vmatmul.mubr.bf16.gmra.mrb[0].mxu0 %v593
        %v633 = vpop.f32.mrb[0].mxu0
        %v634 = vadd.f32 0.0, %v633
        %v635 = vpop.f32.mrb[0].mxu0
        %v636 = vpop.f32.mrb[0].mxu0
        %v637 = vpop.f32.mrb[0].mxu0
        %638 = vdwg.mxu0
        %640 = vrot.lane.b32.xlu0 %v530, 120
        %v641 = vpop.permute.xlu0 %640
        %643 = vrot.lane.b32.xlu0 %v531, 120
        %v644 = vpop.permute.xlu0 %643
        %v646 = vsel %vm533, %v641, 0
        %v649 = vsel %vm533, %v644, 0
        %651 = vmatprep.subr.bf16.mxu0 0
        %652 = vmatpush1.bf16.xpose.msra.mxu0 %v649
        %653 = vmatprep.subr.bf16.mxu0 0
        %654 = vmatpush1.bf16.xpose.msra.mxu0 0
        %655 = vmatprep.subr.bf16.mxu0 0
        %656 = vmatpush1.bf16.xpose.msra.mxu0 0
        %657 = vmatprep.subr.bf16.mxu0 0
        %658 = vmatpush1.bf16.xpose.msra.mxu0 0
        %659 = vmatprep.subr.bf16.mxu0 0
        %660 = vmatpush1.bf16.xpose.msra.mxu0 0
        %661 = vmatprep.subr.bf16.mxu0 0
        %662 = vmatpush1.bf16.xpose.msra.mxu0 0
        %663 = vmatprep.subr.bf16.mxu0 0
        %664 = vmatpush1.bf16.xpose.msra.mxu0 0
        %665 = vmatprep.subr.bf16.mxu0 0
        %666 = vmatpush1.bf16.xpose.msra.mxu0 0
        %667 = vmatprep.subr.bf16.mxu0 0
        %668 = vmatpush1.bf16.xpose.msra.mxu0 0
        %669 = vmatprep.subr.bf16.mxu0 0
        %670 = vmatpush1.bf16.xpose.msra.mxu0 0
        %671 = vmatprep.subr.bf16.mxu0 0
        %672 = vmatpush1.bf16.xpose.msra.mxu0 0
        %673 = vmatprep.subr.bf16.mxu0 0
        %674 = vmatpush1.bf16.xpose.msra.mxu0 0
        %675 = vmatprep.subr.bf16.mxu0 0
        %676 = vmatpush1.bf16.xpose.msra.mxu0 0
        %677 = vmatprep.subr.bf16.mxu0 0
        %678 = vmatpush1.bf16.xpose.msra.mxu0 0
        %679 = vmatprep.subr.bf16.mxu0 0
        %680 = vmatpush1.bf16.xpose.msra.mxu0 0
        %681 = vmatprep.subr.bf16.mxu0 0
        %682 = vmatpush1.bf16.xpose.msra.mxu0 0
        %683 = vmatprep.mubr.bf16.mxu0 0
        %684 = vmatmul.mubr.bf16.gmra.mrb[0].mxu0 %v646
        %v685 = vpop.f32.mrb[0].mxu0
        %v686 = vadd.f32 0.0, %v685
        %v687 = vpop.f32.mrb[0].mxu0
        %v688 = vpop.f32.mrb[0].mxu0
        %v689 = vpop.f32.mrb[0].mxu0
        %690 = vdwg.mxu0
        %v691 = vsel %vm533, %v686, -inf
        %692 = vmax.xlane.f32.xlu0 %v691
        %v693 = vpop.xlane.xlu0 %692
        %v694 = vsub.f32 %v686, %v693
        %v695 = vmul.f32 %v694, 1.442695
        %v696 = vpow.pop %v695
        %v697 = vsel %vm533, %v696, 0.0
        %698 = vadd.xlane.f32.xlu0 %v697
        %v699 = vpop.xlane.xlu0 %698
        %v700 = vrcp.pop %v699
        %v701 = vmul.f32 %v696, %v700
        %v702 = vpack.c.bf16 %v701, %v701
        %704 = vrot.lane.b32.xlu0 %v532, 120
        %v705 = vpop.permute.xlu0 %704
        %v707 = vsel %vm533, %v702, 0
        %v710 = vsel %vm595, %v705, 0
        %712 = vmatprep.subr.bf16.mxu0 0
        %713 = vmatpush1.bf16.msra.mxu0 %v710
        %714 = vmatprep.subr.bf16.mxu0 0
        %715 = vmatpush1.bf16.msra.mxu0 0
        %716 = vmatprep.subr.bf16.mxu0 0
        %717 = vmatpush1.bf16.msra.mxu0 0
        %718 = vmatprep.subr.bf16.mxu0 0
        %719 = vmatpush1.bf16.msra.mxu0 0
        %720 = vmatprep.subr.bf16.mxu0 0
        %721 = vmatpush1.bf16.msra.mxu0 0
        %722 = vmatprep.subr.bf16.mxu0 0
        %723 = vmatpush1.bf16.msra.mxu0 0
        %724 = vmatprep.subr.bf16.mxu0 0
        %725 = vmatpush1.bf16.msra.mxu0 0
        %726 = vmatprep.subr.bf16.mxu0 0
        %727 = vmatpush1.bf16.msra.mxu0 0
        %728 = vmatprep.subr.bf16.mxu0 0
        %729 = vmatpush1.bf16.msra.mxu0 0
        %730 = vmatprep.subr.bf16.mxu0 0
        %731 = vmatpush1.bf16.msra.mxu0 0
        %732 = vmatprep.subr.bf16.mxu0 0
        %733 = vmatpush1.bf16.msra.mxu0 0
        %734 = vmatprep.subr.bf16.mxu0 0
        %735 = vmatpush1.bf16.msra.mxu0 0
        %736 = vmatprep.subr.bf16.mxu0 0
        %737 = vmatpush1.bf16.msra.mxu0 0
        %738 = vmatprep.subr.bf16.mxu0 0
        %739 = vmatpush1.bf16.msra.mxu0 0
        %740 = vmatprep.subr.bf16.mxu0 0
        %741 = vmatpush1.bf16.msra.mxu0 0
        %742 = vmatprep.subr.bf16.mxu0 0
        %743 = vmatpush1.bf16.msra.mxu0 0
        %744 = vmatprep.mubr.bf16.mxu0 0
        %745 = vmatmul.mubr.bf16.gmra.mrb[0].mxu0 %v707
        %v746 = vpop.f32.mrb[0].mxu0
        %v747 = vadd.f32 0.0, %v746
        %v748 = vpop.f32.mrb[0].mxu0
        %v749 = vpop.f32.mrb[0].mxu0
        %v750 = vpop.f32.mrb[0].mxu0
        %751 = vdwg.mxu0
        %752 = vrot.lane.b32.xlu0 %v530, 112
        %v753 = vpop.permute.xlu0 %752
        %754 = vrot.lane.b32.xlu0 %v531, 112
        %v755 = vpop.permute.xlu0 %754
        %v757 = vsel %vm533, %v753, 0
        %v760 = vsel %vm533, %v755, 0
        %762 = vmatprep.subr.bf16.mxu0 0
        %763 = vmatpush1.bf16.xpose.msra.mxu0 %v760
        %764 = vmatprep.subr.bf16.mxu0 0
        %765 = vmatpush1.bf16.xpose.msra.mxu0 0
        %766 = vmatprep.subr.bf16.mxu0 0
        %767 = vmatpush1.bf16.xpose.msra.mxu0 0
        %768 = vmatprep.subr.bf16.mxu0 0
        %769 = vmatpush1.bf16.xpose.msra.mxu0 0
        %770 = vmatprep.subr.bf16.mxu0 0
        %771 = vmatpush1.bf16.xpose.msra.mxu0 0
        %772 = vmatprep.subr.bf16.mxu0 0
        %773 = vmatpush1.bf16.xpose.msra.mxu0 0
        %774 = vmatprep.subr.bf16.mxu0 0
        %775 = vmatpush1.bf16.xpose.msra.mxu0 0
        %776 = vmatprep.subr.bf16.mxu0 0
        %777 = vmatpush1.bf16.xpose.msra.mxu0 0
        %778 = vmatprep.subr.bf16.mxu0 0
        %779 = vmatpush1.bf16.xpose.msra.mxu0 0
        %780 = vmatprep.subr.bf16.mxu0 0
        %781 = vmatpush1.bf16.xpose.msra.mxu0 0
        %782 = vmatprep.subr.bf16.mxu0 0
        %783 = vmatpush1.bf16.xpose.msra.mxu0 0
        %784 = vmatprep.subr.bf16.mxu0 0
        %785 = vmatpush1.bf16.xpose.msra.mxu0 0
        %786 = vmatprep.subr.bf16.mxu0 0
        %787 = vmatpush1.bf16.xpose.msra.mxu0 0
        %788 = vmatprep.subr.bf16.mxu0 0
        %789 = vmatpush1.bf16.xpose.msra.mxu0 0
        %790 = vmatprep.subr.bf16.mxu0 0
        %791 = vmatpush1.bf16.xpose.msra.mxu0 0
        %792 = vmatprep.subr.bf16.mxu0 0
        %793 = vmatpush1.bf16.xpose.msra.mxu0 0
        %794 = vmatprep.mubr.bf16.mxu0 0
        %795 = vmatmul.mubr.bf16.gmra.mrb[0].mxu0 %v757
        %v796 = vpop.f32.mrb[0].mxu0
        %v797 = vadd.f32 0.0, %v796
        %v798 = vpop.f32.mrb[0].mxu0
        %v799 = vpop.f32.mrb[0].mxu0
        %v800 = vpop.f32.mrb[0].mxu0
        %801 = vdwg.mxu0
        %v802 = vsel %vm533, %v797, -inf
        %803 = vmax.xlane.f32.xlu0 %v802
        %v804 = vpop.xlane.xlu0 %803
        %v805 = vsub.f32 %v797, %v804
        %v806 = vmul.f32 %v805, 1.442695
        %v807 = vpow.pop %v806
        %v808 = vsel %vm533, %v807, 0.0
        %809 = vadd.xlane.f32.xlu0 %v808
        %v810 = vpop.xlane.xlu0 %809
        %v811 = vrcp.pop %v810
        %v812 = vmul.f32 %v807, %v811
        %v813 = vpack.c.bf16 %v812, %v812
        %814 = vrot.lane.b32.xlu0 %v532, 112
        %v815 = vpop.permute.xlu0 %814
        %v817 = vsel %vm533, %v813, 0
        %v820 = vsel %vm595, %v815, 0
        %822 = vmatprep.subr.bf16.mxu0 0
        %823 = vmatpush1.bf16.msra.mxu0 %v820
        %824 = vmatprep.subr.bf16.mxu0 0
        %825 = vmatpush1.bf16.msra.mxu0 0
        %826 = vmatprep.subr.bf16.mxu0 0
        %827 = vmatpush1.bf16.msra.mxu0 0
        %828 = vmatprep.subr.bf16.mxu0 0
        %829 = vmatpush1.bf16.msra.mxu0 0
        %830 = vmatprep.subr.bf16.mxu0 0
        %831 = vmatpush1.bf16.msra.mxu0 0
        %832 = vmatprep.subr.bf16.mxu0 0
        %833 = vmatpush1.bf16.msra.mxu0 0
        %834 = vmatprep.subr.bf16.mxu0 0
        %835 = vmatpush1.bf16.msra.mxu0 0
        %836 = vmatprep.subr.bf16.mxu0 0
        %837 = vmatpush1.bf16.msra.mxu0 0
        %838 = vmatprep.subr.bf16.mxu0 0
        %839 = vmatpush1.bf16.msra.mxu0 0
        %840 = vmatprep.subr.bf16.mxu0 0
        %841 = vmatpush1.bf16.msra.mxu0 0
        %842 = vmatprep.subr.bf16.mxu0 0
        %843 = vmatpush1.bf16.msra.mxu0 0
        %844 = vmatprep.subr.bf16.mxu0 0
        %845 = vmatpush1.bf16.msra.mxu0 0
        %846 = vmatprep.subr.bf16.mxu0 0
        %847 = vmatpush1.bf16.msra.mxu0 0
        %848 = vmatprep.subr.bf16.mxu0 0
        %849 = vmatpush1.bf16.msra.mxu0 0
        %850 = vmatprep.subr.bf16.mxu0 0
        %851 = vmatpush1.bf16.msra.mxu0 0
        %852 = vmatprep.subr.bf16.mxu0 0
        %853 = vmatpush1.bf16.msra.mxu0 0
        %854 = vmatprep.mubr.bf16.mxu0 0
        %855 = vmatmul.mubr.bf16.gmra.mrb[0].mxu0 %v817
        %v856 = vpop.f32.mrb[0].mxu0
        %v857 = vadd.f32 0.0, %v856
        %v858 = vpop.f32.mrb[0].mxu0
        %v859 = vpop.f32.mrb[0].mxu0
        %v860 = vpop.f32.mrb[0].mxu0
        %861 = vdwg.mxu0
        %862 = vrot.lane.b32.xlu0 %v530, 104
        %v863 = vpop.permute.xlu0 %862
        %864 = vrot.lane.b32.xlu0 %v531, 104
        %v865 = vpop.permute.xlu0 %864
        %v867 = vsel %vm533, %v863, 0
        %v870 = vsel %vm533, %v865, 0
        %872 = vmatprep.subr.bf16.mxu0 0
        %873 = vmatpush1.bf16.xpose.msra.mxu0 %v870
        %874 = vmatprep.subr.bf16.mxu0 0
        %875 = vmatpush1.bf16.xpose.msra.mxu0 0
        %876 = vmatprep.subr.bf16.mxu0 0
        %877 = vmatpush1.bf16.xpose.msra.mxu0 0
        %878 = vmatprep.subr.bf16.mxu0 0
        %879 = vmatpush1.bf16.xpose.msra.mxu0 0
        %880 = vmatprep.subr.bf16.mxu0 0
        %881 = vmatpush1.bf16.xpose.msra.mxu0 0
        %882 = vmatprep.subr.bf16.mxu0 0
        %883 = vmatpush1.bf16.xpose.msra.mxu0 0
        %884 = vmatprep.subr.bf16.mxu0 0
        %885 = vmatpush1.bf16.xpose.msra.mxu0 0
        %886 = vmatprep.subr.bf16.mxu0 0
        %887 = vmatpush1.bf16.xpose.msra.mxu0 0
        %888 = vmatprep.subr.bf16.mxu0 0
        %889 = vmatpush1.bf16.xpose.msra.mxu0 0
        %890 = vmatprep.subr.bf16.mxu0 0
        %891 = vmatpush1.bf16.xpose.msra.mxu0 0
        %892 = vmatprep.subr.bf16.mxu0 0
        %893 = vmatpush1.bf16.xpose.msra.mxu0 0
        %894 = vmatprep.subr.bf16.mxu0 0
        %895 = vmatpush1.bf16.xpose.msra.mxu0 0
        %896 = vmatprep.subr.bf16.mxu0 0
        %897 = vmatpush1.bf16.xpose.msra.mxu0 0
        %898 = vmatprep.subr.bf16.mxu0 0
        %899 = vmatpush1.bf16.xpose.msra.mxu0 0
        %900 = vmatprep.subr.bf16.mxu0 0
        %901 = vmatpush1.bf16.xpose.msra.mxu0 0
        %902 = vmatprep.subr.bf16.mxu0 0
        %903 = vmatpush1.bf16.xpose.msra.mxu0 0
        %904 = vmatprep.mubr.bf16.mxu0 0
        %905 = vmatmul.mubr.bf16.gmra.mrb[0].mxu0 %v867
        %v906 = vpop.f32.mrb[0].mxu0
        %v907 = vadd.f32 0.0, %v906
        %v908 = vpop.f32.mrb[0].mxu0
        %v909 = vpop.f32.mrb[0].mxu0
        %v910 = vpop.f32.mrb[0].mxu0
        %911 = vdwg.mxu0
        %v912 = vsel %vm533, %v907, -inf
        %913 = vmax.xlane.f32.xlu0 %v912
        %v914 = vpop.xlane.xlu0 %913
        %v915 = vsub.f32 %v907, %v914
        %v916 = vmul.f32 %v915, 1.442695
        %v917 = vpow.pop %v916
        %v918 = vsel %vm533, %v917, 0.0
        %919 = vadd.xlane.f32.xlu0 %v918
        %v920 = vpop.xlane.xlu0 %919
        %v921 = vrcp.pop %v920
        %v922 = vmul.f32 %v917, %v921
        %v923 = vpack.c.bf16 %v922, %v922
        %924 = vrot.lane.b32.xlu0 %v532, 104
        %v925 = vpop.permute.xlu0 %924
        %v927 = vsel %vm533, %v923, 0
        %v930 = vsel %vm595, %v925, 0
        %932 = vmatprep.subr.bf16.mxu0 0
        %933 = vmatpush1.bf16.msra.mxu0 %v930
        %934 = vmatprep.subr.bf16.mxu0 0
        %935 = vmatpush1.bf16.msra.mxu0 0
        %936 = vmatprep.subr.bf16.mxu0 0
        %937 = vmatpush1.bf16.msra.mxu0 0
        %938 = vmatprep.subr.bf16.mxu0 0
        %939 = vmatpush1.bf16.msra.mxu0 0
        %940 = vmatprep.subr.bf16.mxu0 0
        %941 = vmatpush1.bf16.msra.mxu0 0
        %942 = vmatprep.subr.bf16.mxu0 0
        %943 = vmatpush1.bf16.msra.mxu0 0
        %944 = vmatprep.subr.bf16.mxu0 0
        %945 = vmatpush1.bf16.msra.mxu0 0
        %946 = vmatprep.subr.bf16.mxu0 0
        %947 = vmatpush1.bf16.msra.mxu0 0
        %948 = vmatprep.subr.bf16.mxu0 0
        %949 = vmatpush1.bf16.msra.mxu0 0
        %950 = vmatprep.subr.bf16.mxu0 0
        %951 = vmatpush1.bf16.msra.mxu0 0
        %952 = vmatprep.subr.bf16.mxu0 0
        %953 = vmatpush1.bf16.msra.mxu0 0
        %954 = vmatprep.subr.bf16.mxu0 0
        %955 = vmatpush1.bf16.msra.mxu0 0
        %956 = vmatprep.subr.bf16.mxu0 0
        %957 = vmatpush1.bf16.msra.mxu0 0
        %958 = vmatprep.subr.bf16.mxu0 0
        %959 = vmatpush1.bf16.msra.mxu0 0
        %960 = vmatprep.subr.bf16.mxu0 0
        %961 = vmatpush1.bf16.msra.mxu0 0
        %962 = vmatprep.subr.bf16.mxu0 0
        %963 = vmatpush1.bf16.msra.mxu0 0
        %964 = vmatprep.mubr.bf16.mxu0 0
        %965 = vmatmul.mubr.bf16.gmra.mrb[0].mxu0 %v927
        %v966 = vpop.f32.mrb[0].mxu0
        %v967 = vadd.f32 0.0, %v966
        %v968 = vpop.f32.mrb[0].mxu0
        %v969 = vpop.f32.mrb[0].mxu0
        %v970 = vpop.f32.mrb[0].mxu0
        %971 = vdwg.mxu0
        %973 = vrot.lane.b32.xlu0 %v747, 8
        %v974 = vpop.permute.xlu0 %973
        %977 = vrot.lane.b32.xlu0 %v857, 16
        %v978 = vpop.permute.xlu0 %977
        %981 = vrot.lane.b32.xlu0 %v967, 24
        %v982 = vpop.permute.xlu0 %981
        %v984 = vsel %vm533, %v634, %v974
        %vm985 = vcmask 130048
        %v986 = vsel %vm985, %v984, %v978
        %vm987 = vcmask 195584
        %v988 = vsel %vm987, %v986, %v982
        %vm989 = vcmask 261120
        %v990 = vsel %vm989, %v988, 0.0
        %v991 = vpack.c.bf16 %v990, %v990
        %v992 = vld [vmem:[#allocation7] sm:$0xf]
        %v993 = vld [vmem:[#allocation7 + $0x4] sm:$0xf]
        %v994 = vld [vmem:[#allocation7 + $0x8] sm:$0xf]
        %v995 = vld [vmem:[#allocation7 + $0xc] sm:$0xf]
        %v996 = vld [vmem:[#allocation7 + $0x10] sm:$0xf]
        %v997 = vld [vmem:[#allocation7 + $0x14] sm:$0xf]
        %v998 = vld [vmem:[#allocation7 + $0x18] sm:$0xf]
        %v999 = vld [vmem:[#allocation7 + $0x1c] sm:$0xf]
        %v1000 = vld [vmem:[#allocation7 + $0x20] sm:$0xf]
        %v1001 = vld [vmem:[#allocation7 + $0x24] sm:$0xf]
        %v1002 = vld [vmem:[#allocation7 + $0x28] sm:$0xf]
        %v1003 = vld [vmem:[#allocation7 + $0x2c] sm:$0xf]
        %v1004 = vld [vmem:[#allocation7 + $0x30] sm:$0xf]
        %v1005 = vld [vmem:[#allocation7 + $0x34] sm:$0xf]
        %v1006 = vld [vmem:[#allocation7 + $0x38] sm:$0xf]
        %v1007 = vld [vmem:[#allocation7 + $0x3c] sm:$0xf]
        %v1008 = vld [vmem:[%s4] sm:$0x1]
        %v1010 = vlaneseq
        %v1011 = vshrl.u32 %v1010, 7
        %v1012 = vsub.s32 0, %v1011
        %v1013 = vrot.slane %v1008, %v1012
        %v1031 = vunpack.c.l.b16 %v992
        %v1032 = vunpack.c.l.b16 %v993
        %v1033 = vunpack.c.l.b16 %v994
        %v1034 = vunpack.c.l.b16 %v995
        %v1035 = vunpack.c.l.b16 %v996
        %v1036 = vunpack.c.l.b16 %v997
        %v1037 = vunpack.c.l.b16 %v998
        %v1038 = vunpack.c.l.b16 %v999
        %v1039 = vunpack.c.l.b16 %v1000
        %v1040 = vunpack.c.l.b16 %v1001
        %v1041 = vunpack.c.l.b16 %v1002
        %v1042 = vunpack.c.l.b16 %v1003
        %v1043 = vunpack.c.l.b16 %v1004
        %v1044 = vunpack.c.l.b16 %v1005
        %v1045 = vunpack.c.l.b16 %v1006
        %v1046 = vunpack.c.l.b16 %v1007
        %v1047 = vpack.c.b16 %v1032, %v1031
        %v1048 = vpack.c.b16 %v1034, %v1033
        %v1049 = vpack.c.b16 %v1036, %v1035
        %v1050 = vpack.c.b16 %v1038, %v1037
        %v1051 = vpack.c.b16 %v1040, %v1039
        %v1052 = vpack.c.b16 %v1042, %v1041
        %v1053 = vpack.c.b16 %v1044, %v1043
        %v1054 = vpack.c.b16 %v1046, %v1045
        %1063 = vmatprep.subr.bf16.mxu0 0
        %1064 = vmatpush1.bf16.msra.mxu0 %v1047
        %1065 = vmatprep.subr.bf16.mxu0 0
        %1066 = vmatpush1.bf16.msra.mxu0 %v1048
        %1067 = vmatprep.subr.bf16.mxu0 0
        %1068 = vmatpush1.bf16.msra.mxu0 %v1049
        %1069 = vmatprep.subr.bf16.mxu0 0
        %1070 = vmatpush1.bf16.msra.mxu0 %v1050
        %1071 = vmatprep.subr.bf16.mxu0 0
        %1072 = vmatpush1.bf16.msra.mxu0 %v1051
        %1073 = vmatprep.subr.bf16.mxu0 0
        %1074 = vmatpush1.bf16.msra.mxu0 %v1052
        %1075 = vmatprep.subr.bf16.mxu0 0
        %1076 = vmatpush1.bf16.msra.mxu0 %v1053
        %1077 = vmatprep.subr.bf16.mxu0 0
        %1078 = vmatpush1.bf16.msra.mxu0 %v1054
        %1079 = vmatprep.subr.bf16.mxu0 0
        %1080 = vmatpush1.bf16.msra.mxu0 0
        %1081 = vmatprep.subr.bf16.mxu0 0
        %1082 = vmatpush1.bf16.msra.mxu0 0
        %1083 = vmatprep.subr.bf16.mxu0 0
        %1084 = vmatpush1.bf16.msra.mxu0 0
        %1085 = vmatprep.subr.bf16.mxu0 0
        %1086 = vmatpush1.bf16.msra.mxu0 0
        %1087 = vmatprep.subr.bf16.mxu0 0
        %1088 = vmatpush1.bf16.msra.mxu0 0
        %1089 = vmatprep.subr.bf16.mxu0 0
        %1090 = vmatpush1.bf16.msra.mxu0 0
        %1091 = vmatprep.subr.bf16.mxu0 0
        %1092 = vmatpush1.bf16.msra.mxu0 0
        %1093 = vmatprep.subr.bf16.mxu0 0
        %1094 = vmatpush1.bf16.msra.mxu0 0
        %1095 = vmatprep.mubr.bf16.mxu0 0
        %1096 = vmatmul.mubr.bf16.gmra.mrb[0].mxu0 %v991
        %v1097 = vpop.f32.mrb[0].mxu0
        %v1098 = vadd.f32 %v1013, %v1097
        %v1099 = vpop.f32.mrb[0].mxu0
        %v1100 = vpop.f32.mrb[0].mxu0
        %v1101 = vpop.f32.mrb[0].mxu0
        %1102 = vdwg.mxu0
        %v1103 = vld [vmem:[%s234] sm:$0xff]
        %v1104 = vadd.f32 %v1098, %v1103
        %1105 = vst [vmem:[%s268] sm:$0xff] %v1104
        %s1106 = sand.u32 %s141, 1
        %s1107 = scalar_lea.sflag [#allocation4], %s1106
        %s1108 = sand.u32 %s141, 1
        %s1109 = smul.addr %s1108, 8
        %s1110 = scalar_lea.vmem [#allocation8], %s1109
        // Predicated region
        $region53: #{tpu_custom_call.1} parent=39 // pred_check
          %p1111 = pneg %p151
        $region54: #{tpu_custom_call.1} parent=39 // pred_check_branch
          %1113 = sbr.rel (%p1111) target = $region56
        $region55: #{tpu_custom_call.1} parent=39 // pred_region
          %s1115 = ssub.s32 128, 128
          %1116 = vsyncadd %s1107, %s1115
          %s1117 = smul.addr %s23, 128
          %s1118 = scalar_lea.hbm %s5, %s1117
          %s1120 = sshll.u32 %s1110, 4
          %s1121 = int_to_ptr.vmem [resolvable:$true] %s1120
          %1123 = dma.vmem_to_hbm [thread:$0]  %s1121, 128, %s1118, %s1107
        $region56: #{tpu_custom_call.1} parent=39 // pred_fallthru
          _
      $region40: #{tpu_custom_call.1} parent=5 // pred_fallthru
        _
      %p1124 = scmp.le.s32.totalorder 2, %s18
      // Predicated region
      $region57: #{tpu_custom_call.1} parent=5 // pred_check
        %p1125 = pneg %p1124
      $region58: #{tpu_custom_call.1} parent=5 // pred_check_branch
        %1127 = sbr.rel (%p1125) target = $region60
      $region59: #{tpu_custom_call.1} parent=5 // pred_region
        %s1128 = ssub.s32 %s18, 2
        // Predicated region
        $region61: #{tpu_custom_call.1} parent=59 // pred_check
          %p1129 = pneg %p157
        $region62: #{tpu_custom_call.1} parent=59 // pred_check_branch
          %1131 = sbr.rel (%p1129) target = $region64
        $region63: #{tpu_custom_call.1} parent=59 // pred_region
          %s1132 = sand.u32 %s142, 1
          %s1133 = scalar_lea.sflag [#allocation4], %s1132
          %s1134 = sand.u32 %s142, 1
          %s1135 = smul.addr %s1134, 8
          %s1136 = scalar_lea.vmem [#allocation8], %s1135
          %1137 = dma.done %s1133, 128
        $region64: #{tpu_custom_call.1} parent=59 // pred_fallthru
          _
      $region60: #{tpu_custom_call.1} parent=5 // pred_fallthru
        _
    $region6: #{tpu_custom_call.1} parent=1 // loop_footer
      %s22 = sadd.s32 1, %s18
    $region7: #{tpu_custom_call.1} parent=1 // loop_footer_branch
      %17 = sbr.rel target = $region3
    $region8: #{tpu_custom_call.1} parent=1 // loop_exit
      _
    %1138 = vsyncpa [#allocation3], 1
    %s1139 = scalar_lea.sflag [#allocation3], 1
    %1140 = vsyncpa %s1139, 1
    %1141 = vsyncpa [#allocation6], 1
    %1142 = vsyncpa [#allocation4], 1
    %s1143 = scalar_lea.sflag [#allocation4], 1
    %1144 = vsyncpa %s1143, 1

</llo_original>
